<compile_context>
chip_gen: v7x
topology: tpu7x:2x2x1
jax: 0.10.0
libtpu: 0.0.40
codegen_flags: <defaults>
</compile_context>

<pallas_src>
import math

import jax
import jax.numpy as jnp
from jax.experimental import pallas as pl
from jax.experimental.pallas import tpu as pltpu


# ---------------------------------------------------------------------------
# Shared numerics (f32)
# ---------------------------------------------------------------------------
def _layernorm(x, g, b, eps=1e-5):
    x = x.astype(jnp.float32)
    mean = jnp.mean(x, axis=-1, keepdims=True)
    var = jnp.mean((x - mean) ** 2, axis=-1, keepdims=True)
    return (x - mean) * jax.lax.rsqrt(var + eps) * g + b


# ---------------------------------------------------------------------------
# Fused transformer encoder layer kernel (grid = (batch, query-row tiles))
# ---------------------------------------------------------------------------
def transformer_layer(x, mask, p, num_heads, *, tq=None):
    B, S, H = x.shape
    dH = H // num_heads
    F_dim = p["w1"].shape[1]

    if tq is None:
        # Largest tile that fits: tq = S (n_q = 1) up to 512, so K/V are
        # projected exactly once per batch element.
        tq = S if S <= 512 else 512
    assert S % tq == 0
    n_q = S // tq

    def kernel(x_ref, m_ref,
               wqkv_ref, bqkv_ref, wo_ref, bo_ref, g1_ref, be1_ref,
               w1_ref, b1_ref, w2_ref, b2_ref, g2_ref, be2_ref,
               o_ref, q_scr, k_scr, v_scr, ctx_ref):
        qi = pl.program_id(1)

        # Fused QKV projection over the full sequence, computed once per batch
        # element (qi iterates innermost and is marked "arbitrary"); results
        # persist in VMEM scratch so Q/K/V are never recomputed per tile.
        @pl.when(qi == 0)
        def _():
            xkv = x_ref[0]                                        # (S, H) bf16
            qkv = (jnp.dot(xkv, wqkv_ref[...],
                           preferred_element_type=jnp.float32)
                   + bqkv_ref[0]).astype(jnp.bfloat16)            # (S, 3H)
            q_scr[...] = qkv[:, :H]        # 1/sqrt(dH) pre-folded into wq/bq
            k_scr[...] = qkv[:, H:2 * H]
            v_scr[...] = qkv[:, 2 * H:]

        qstart = pl.multiple_of(qi * tq, tq)
        xq = x_ref[0, pl.ds(qstart, tq), :]                       # (tq, H) bf16
        q = q_scr[pl.ds(qstart, tq), :]                           # (tq, H) bf16

        # Additive key mask, broadcast once (hoisted out of the head loop).
        neg = jnp.broadcast_to((1.0 - m_ref[0]) * (-1e9), (tq, S))  # (tq,S) f32

        # Per-head attention: q @ k^T by contracting last dims (no explicit
        # XLU transpose); per-head context written into the VMEM ctx slab.
        # TODO(synk): dH(=64)-lane head slices under-fill the 256-wide MXU on
        # v6e/v7x; accepted per review since projections + FFN dominate FLOPs.
        dn = (((1,), (1,)), ((), ()))
        for h in range(num_heads):
            sl = slice(h * dH, (h + 1) * dH)
            s = jax.lax.dot_general(q[:, sl], k_scr[:, sl], dn,
                                    preferred_element_type=jnp.float32)  # (tq,S)
            s = s + neg
            s = s - jnp.max(s, axis=-1, keepdims=True)
            e = jnp.exp(s)
            inv = pl.reciprocal(jnp.sum(e, axis=-1, keepdims=True), approx=True)
            prob = (e * inv).astype(jnp.bfloat16)
            ctx_ref[:, sl] = jnp.dot(
                prob, v_scr[:, sl],
                preferred_element_type=jnp.float32).astype(jnp.bfloat16)

        attn = jnp.dot(ctx_ref[...], wo_ref[...],
                       preferred_element_type=jnp.float32) + bo_ref[0]
        h1 = _layernorm(xq.astype(jnp.float32) + attn, g1_ref[0], be1_ref[0])

        ff = jnp.dot(h1.astype(jnp.bfloat16), w1_ref[...],
                     preferred_element_type=jnp.float32) + b1_ref[0]
        ff = jax.nn.gelu(ff, approximate=True)       # tanh GELU -> EUP slot
        ff = jnp.dot(ff.astype(jnp.bfloat16), w2_ref[...],
                     preferred_element_type=jnp.float32) + b2_ref[0]

        o_ref[0] = _layernorm(h1 + ff, g2_ref[0], be2_ref[0]).astype(o_ref.dtype)

    # Grid-invariant weights: single-buffered (same block index every step,
    # so double-buffering would only double their VMEM footprint).
    def const_spec(shape):
        zeros = (0,) * len(shape)
        return pl.BlockSpec(shape, lambda b, qi: zeros,
                            pipeline_mode=pl.Buffered(1))

    in_specs = [
        pl.BlockSpec((1, S, H), lambda b, qi: (b, 0, 0)),  # x (single full-seq stream)
        pl.BlockSpec((1, 1, S), lambda b, qi: (b, 0, 0)),  # key mask
        const_spec((H, 3 * H)), const_spec((1, 3 * H)),    # fused wqkv, bqkv
        const_spec((H, H)), const_spec((1, H)),            # wo, bo
        const_spec((1, H)), const_spec((1, H)),            # ln1 gamma, beta
        const_spec((H, F_dim)), const_spec((1, F_dim)),    # w1, b1
        const_spec((F_dim, H)), const_spec((1, H)),        # w2, b2
        const_spec((1, H)), const_spec((1, H)),            # ln2 gamma, beta
    ]

    return pl.pallas_call(
        kernel,
        out_shape=jax.ShapeDtypeStruct((B, S, H), x.dtype),
        grid=(B, n_q),
        in_specs=in_specs,
        out_specs=pl.BlockSpec((1, tq, H), lambda b, qi: (b, qi, 0)),
        scratch_shapes=[
            pltpu.VMEM((S, H), jnp.bfloat16),    # persisted Q (scale folded)
            pltpu.VMEM((S, H), jnp.bfloat16),    # persisted K
            pltpu.VMEM((S, H), jnp.bfloat16),    # persisted V
            pltpu.VMEM((tq, H), jnp.bfloat16),   # per-head context slab
        ],
        compiler_params=pltpu.CompilerParams(
            # Batch axis stays "parallel" (v7x has 2 TensorCores); qi is
            # "arbitrary" because of the persisted-K/V dependency on ordering.
            dimension_semantics=("parallel", "arbitrary"),
            vmem_limit_bytes=48 * 1024 * 1024,
        ),
    )(
        x, mask,
        p["wqkv"], p["bqkv"], p["wo"], p["bo"],
        p["ln1_g"], p["ln1_b"],
        p["w1"], p["b1"], p["w2"], p["b2"],
        p["ln2_g"], p["ln2_b"],
    )


# ---------------------------------------------------------------------------
# Parameter construction (deterministic, synthetic; weights stored in bf16)
# ---------------------------------------------------------------------------
def init_params(key, num_layers, H, F_dim, vocab, max_pos, num_heads):
    keys = jax.random.split(key, 2 + num_layers)
    wdt = jnp.bfloat16
    dH = H // num_heads
    scale = 1.0 / math.sqrt(dH)
    params = {
        "word_emb": jax.random.normal(keys[0], (vocab, H), jnp.float32) * 0.02,
        "pos_emb": jax.random.normal(keys[1], (max_pos, H), jnp.float32) * 0.02,
        "emb_ln_g": jnp.ones((H,), jnp.float32),
        "emb_ln_b": jnp.zeros((H,), jnp.float32),
        "layers": [],
    }
    for l in range(num_layers):
        ks = jax.random.split(keys[2 + l], 6)
        wq = jax.random.normal(ks[0], (H, H), jnp.float32) * 0.02
        wk = jax.random.normal(ks[1], (H, H), jnp.float32) * 0.02
        wv = jax.random.normal(ks[2], (H, H), jnp.float32) * 0.02
        bq = jnp.zeros((H,), jnp.float32)
        bk = jnp.zeros((H,), jnp.float32)
        bv = jnp.zeros((H,), jnp.float32)
        # Fused QKV weight; 1/sqrt(dH) folded into the Q columns / Q bias.
        wqkv = jnp.concatenate([wq * scale, wk, wv], axis=1).astype(wdt)
        bqkv = jnp.concatenate([bq * scale, bk, bv]).reshape(1, 3 * H)
        params["layers"].append(dict(
            wqkv=wqkv, bqkv=bqkv,
            wo=(jax.random.normal(ks[3], (H, H), jnp.float32) * 0.02).astype(wdt),
            bo=jnp.zeros((1, H), jnp.float32),
            ln1_g=jnp.ones((1, H), jnp.float32),
            ln1_b=jnp.zeros((1, H), jnp.float32),
            w1=(jax.random.normal(ks[4], (H, F_dim), jnp.float32) * 0.02).astype(wdt),
            b1=jnp.zeros((1, F_dim), jnp.float32),
            w2=(jax.random.normal(ks[5], (F_dim, H), jnp.float32) * 0.02).astype(wdt),
            b2=jnp.zeros((1, H), jnp.float32),
            ln2_g=jnp.ones((1, H), jnp.float32),
            ln2_b=jnp.zeros((1, H), jnp.float32),
        ))
    return params


# ---------------------------------------------------------------------------
# MeltingPotEncoder.forward equivalent
# ---------------------------------------------------------------------------
def melting_pot_encoder_forward(params, input_ids, attn_mask, num_heads):
    B, S = input_ids.shape
    # Glue: embedding gather + positional add + embedding LayerNorm in plain
    # JAX (trivially mem-bound; a standalone pallas_call only added launch
    # overhead and an extra HBM round-trip of the activation tensor).
    x = params["word_emb"][input_ids] + params["pos_emb"][jnp.arange(S)][None, :, :]
    x = _layernorm(x, params["emb_ln_g"], params["emb_ln_b"])
    x = x.astype(jnp.bfloat16)
    mask = attn_mask.astype(jnp.float32).reshape(B, 1, S)
    for lp in params["layers"]:
        x = transformer_layer(x, mask, lp, num_heads)
    # nn.Dropout(0.1) is identity in eval mode.
    # TODO(synk): train-mode dropout (random masking) intentionally omitted.
    # torch.stack([output[i][0] for i in range(len(output))]) == CLS tokens.
    return x[:, 0, :].astype(jnp.float32)


if __name__ == "__main__":
    B, S, H, NUM_HEADS, FFN, LAYERS, VOCAB, MAX_POS = 2, 8, 32, 4, 64, 2, 100, 16

    key = jax.random.PRNGKey(0)
    k_params, k_ids = jax.random.split(key)
    params = init_params(k_params, LAYERS, H, FFN, VOCAB, MAX_POS, NUM_HEADS)

    input_ids = jax.random.randint(k_ids, (B, S), 0, VOCAB, dtype=jnp.int32)
    lengths = jnp.array([S, 5], dtype=jnp.int32)
    attn_mask = (jnp.arange(S)[None, :] < lengths[:, None]).astype(jnp.int32)

    out = melting_pot_encoder_forward(params, input_ids, attn_mask, NUM_HEADS)
    out = jax.block_until_ready(out)
    assert out.shape == (B, H) and out.dtype == jnp.float32
    assert bool(jnp.all(jnp.isfinite(out)))
    print("KERNEL_OK")
</pallas_src>

<mosaic_0001>
module attributes {stable_mosaic.version = 11 : i64} {
  func.func @kernel(%arg0: i32, %arg1: i32, %arg2: memref<1x8x32xbf16, #tpu.memory_space<vmem>>, %arg3: memref<1x1x8xf32, #tpu.memory_space<vmem>>, %arg4: memref<32x96xbf16, #tpu.memory_space<vmem>>, %arg5: memref<1x96xf32, #tpu.memory_space<vmem>>, %arg6: memref<32x32xbf16, #tpu.memory_space<vmem>>, %arg7: memref<1x32xf32, #tpu.memory_space<vmem>>, %arg8: memref<1x32xf32, #tpu.memory_space<vmem>>, %arg9: memref<1x32xf32, #tpu.memory_space<vmem>>, %arg10: memref<32x64xbf16, #tpu.memory_space<vmem>>, %arg11: memref<1x64xf32, #tpu.memory_space<vmem>>, %arg12: memref<64x32xbf16, #tpu.memory_space<vmem>>, %arg13: memref<1x32xf32, #tpu.memory_space<vmem>>, %arg14: memref<1x32xf32, #tpu.memory_space<vmem>>, %arg15: memref<1x32xf32, #tpu.memory_space<vmem>>, %arg16: memref<1x8x32xbf16, #tpu.memory_space<vmem>>, %arg17: memref<8x32xbf16, #tpu.memory_space<vmem>>, %arg18: memref<8x32xbf16, #tpu.memory_space<vmem>>, %arg19: memref<8x32xbf16, #tpu.memory_space<vmem>>, %arg20: memref<8x32xbf16, #tpu.memory_space<vmem>>) attributes {dimension_semantics = [#tpu.dimension_semantics<parallel>, #tpu.dimension_semantics<arbitrary>], iteration_bounds = array<i64: 2, 1>, scalar_prefetch = 0 : i64, scratch_operands = 4 : i64, tpu.core_type = #tpu.core_type<tc>, window_params = [{transform_indices = @transform_0, window_bounds = array<i64: 1, 8, 32>}, {transform_indices = @transform_1, window_bounds = array<i64: 1, 1, 8>}, {pipeline_mode = #tpu.pipeline_mode<synchronous>, transform_indices = @transform_2, window_bounds = array<i64: 32, 96>}, {pipeline_mode = #tpu.pipeline_mode<synchronous>, transform_indices = @transform_3, window_bounds = array<i64: 1, 96>}, {pipeline_mode = #tpu.pipeline_mode<synchronous>, transform_indices = @transform_4, window_bounds = array<i64: 32, 32>}, {pipeline_mode = #tpu.pipeline_mode<synchronous>, transform_indices = @transform_5, window_bounds = array<i64: 1, 32>}, {pipeline_mode = #tpu.pipeline_mode<synchronous>, transform_indices = @transform_6, window_bounds = array<i64: 1, 32>}, {pipeline_mode = #tpu.pipeline_mode<synchronous>, transform_indices = @transform_7, window_bounds = array<i64: 1, 32>}, {pipeline_mode = #tpu.pipeline_mode<synchronous>, transform_indices = @transform_8, window_bounds = array<i64: 32, 64>}, {pipeline_mode = #tpu.pipeline_mode<synchronous>, transform_indices = @transform_9, window_bounds = array<i64: 1, 64>}, {pipeline_mode = #tpu.pipeline_mode<synchronous>, transform_indices = @transform_10, window_bounds = array<i64: 64, 32>}, {pipeline_mode = #tpu.pipeline_mode<synchronous>, transform_indices = @transform_11, window_bounds = array<i64: 1, 32>}, {pipeline_mode = #tpu.pipeline_mode<synchronous>, transform_indices = @transform_12, window_bounds = array<i64: 1, 32>}, {pipeline_mode = #tpu.pipeline_mode<synchronous>, transform_indices = @transform_13, window_bounds = array<i64: 1, 32>}, {transform_indices = @transform_14, window_bounds = array<i64: 1, 8, 32>}]} {
    %c0_i32 = arith.constant 0 : i32
    %0 = arith.cmpi eq, %arg1, %c0_i32 : i32
    %1 = arith.extui %0 : i1 to i32
    %c0_i32_0 = arith.constant 0 : i32
    %2 = arith.cmpi ne, %1, %c0_i32_0 : i32
    scf.if %2 {
      %c0_86 = arith.constant 0 : index
      %c0_87 = arith.constant 0 : index
      %c0_88 = arith.constant 0 : index
      %194 = vector.load %arg2[%c0_86, %c0_87, %c0_88] : memref<1x8x32xbf16, #tpu.memory_space<vmem>>, vector<1x8x32xbf16>
      %195 = vector.shape_cast %194 : vector<1x8x32xbf16> to vector<8x32xbf16>
      %c0_89 = arith.constant 0 : index
      %c0_90 = arith.constant 0 : index
      %196 = vector.load %arg4[%c0_89, %c0_90] : memref<32x96xbf16, #tpu.memory_space<vmem>>, vector<32x96xbf16>
      %cst_91 = arith.constant dense<0.000000e+00> : vector<8x96xf32>
      %197 = tpu.matmul %195, %196, %cst_91 {dimension_numbers = #tpu.dot_dimension_numbers<[1], [0], [0], [1], [0, 0, 1, 1], [], []>} : vector<8x32xbf16>, vector<32x96xbf16>, vector<8x96xf32> -> vector<8x96xf32>
      %c0_92 = arith.constant 0 : index
      %c0_93 = arith.constant 0 : index
      %198 = vector.load %arg5[%c0_92, %c0_93] : memref<1x96xf32, #tpu.memory_space<vmem>>, vector<1x96xf32>
      %199 = vector.shape_cast %198 : vector<1x96xf32> to vector<96xf32>
      %200 = vector.shape_cast %199 : vector<96xf32> to vector<1x96xf32>
      %201 = vector.broadcast %200 : vector<1x96xf32> to vector<8x96xf32>
      %202 = arith.addf %197, %201 : vector<8x96xf32>
      %203 = arith.truncf %202 : vector<8x96xf32> to vector<8x96xbf16>
      %204 = vector.extract_strided_slice %203 {offsets = [0, 0], sizes = [8, 32], strides = [1, 1]} : vector<8x96xbf16> to vector<8x32xbf16>
      %c0_94 = arith.constant 0 : index
      %c0_95 = arith.constant 0 : index
      %205 = vector.load %arg17[%c0_94, %c0_95] : memref<8x32xbf16, #tpu.memory_space<vmem>>, vector<8x32xbf16>
      tpu.vector_store %arg17[%c0_94, %c0_95], %204 {strides = array<i32>} : memref<8x32xbf16, #tpu.memory_space<vmem>>, vector<8x32xbf16>,
      %206 = vector.extract_strided_slice %203 {offsets = [0, 32], sizes = [8, 32], strides = [1, 1]} : vector<8x96xbf16> to vector<8x32xbf16>
      %c0_96 = arith.constant 0 : index
      %c0_97 = arith.constant 0 : index
      %207 = vector.load %arg18[%c0_96, %c0_97] : memref<8x32xbf16, #tpu.memory_space<vmem>>, vector<8x32xbf16>
      tpu.vector_store %arg18[%c0_96, %c0_97], %206 {strides = array<i32>} : memref<8x32xbf16, #tpu.memory_space<vmem>>, vector<8x32xbf16>,
      %208 = vector.extract_strided_slice %203 {offsets = [0, 64], sizes = [8, 32], strides = [1, 1]} : vector<8x96xbf16> to vector<8x32xbf16>
      %c0_98 = arith.constant 0 : index
      %c0_99 = arith.constant 0 : index
      %209 = vector.load %arg19[%c0_98, %c0_99] : memref<8x32xbf16, #tpu.memory_space<vmem>>, vector<8x32xbf16>
      tpu.vector_store %arg19[%c0_98, %c0_99], %208 {strides = array<i32>} : memref<8x32xbf16, #tpu.memory_space<vmem>>, vector<8x32xbf16>,
    } else {
    }
    %c8_i32 = arith.constant 8 : i32
    %3 = arith.muli %arg1, %c8_i32 : i32
    %4 = tpu.assume_multiple %3, 8 : i32
    %c0 = arith.constant 0 : index
    %5 = arith.index_cast %4 : i32 to index
    %c0_1 = arith.constant 0 : index
    %6 = vector.load %arg2[%c0, %5, %c0_1] : memref<1x8x32xbf16, #tpu.memory_space<vmem>>, vector<1x8x32xbf16>
    %7 = vector.shape_cast %6 : vector<1x8x32xbf16> to vector<8x32xbf16>
    %8 = arith.index_cast %4 : i32 to index
    %c0_2 = arith.constant 0 : index
    %9 = vector.load %arg17[%8, %c0_2] : memref<8x32xbf16, #tpu.memory_space<vmem>>, vector<8x32xbf16>
    %c0_3 = arith.constant 0 : index
    %c0_4 = arith.constant 0 : index
    %c0_5 = arith.constant 0 : index
    %10 = vector.load %arg3[%c0_3, %c0_4, %c0_5] : memref<1x1x8xf32, #tpu.memory_space<vmem>>, vector<1x1x8xf32>
    %11 = vector.shape_cast %10 : vector<1x1x8xf32> to vector<1x8xf32>
    %cst = arith.constant 1.000000e+00 : f32
    %12 = vector.broadcast %cst : f32 to vector<1x8xf32>
    %13 = arith.subf %12, %11 : vector<1x8xf32>
    %cst_6 = arith.constant -1.000000e+09 : f32
    %14 = vector.broadcast %cst_6 : f32 to vector<1x8xf32>
    %15 = arith.mulf %13, %14 : vector<1x8xf32>
    %16 = vector.shape_cast %15 : vector<1x8xf32> to vector<1x8xf32>
    %17 = vector.broadcast %16 : vector<1x8xf32> to vector<8x8xf32>
    %18 = vector.extract_strided_slice %9 {offsets = [0, 0], sizes = [8, 8], strides = [1, 1]} : vector<8x32xbf16> to vector<8x8xbf16>
    %c0_7 = arith.constant 0 : index
    %c0_8 = arith.constant 0 : index
    %19 = vector.load %arg18[%c0_7, %c0_8] : memref<8x32xbf16, #tpu.memory_space<vmem>>, vector<8x8xbf16>
    %cst_9 = arith.constant dense<0.000000e+00> : vector<8x8xf32>
    %20 = tpu.matmul %18, %19, %cst_9 {dimension_numbers = #tpu.dot_dimension_numbers<[1], [1], [0], [0], [0, 0, 1, 0], [], []>} : vector<8x8xbf16>, vector<8x8xbf16>, vector<8x8xf32> -> vector<8x8xf32>
    %21 = arith.addf %20, %17 : vector<8x8xf32>
    %cst_10 = arith.constant dense<0xFF800000> : vector<8xf32>
    %22 = vector.multi_reduction <maximumf>, %21, %cst_10 [1] : vector<8x8xf32> to vector<8xf32>
    %23 = vector.shape_cast %22 : vector<8xf32> to vector<8x1xf32>
    %24 = vector.broadcast %23 : vector<8x1xf32> to vector<8x8xf32>
    %25 = arith.subf %21, %24 : vector<8x8xf32>
    %26 = math.exp %25 : vector<8x8xf32>
    %cst_11 = arith.constant dense<0.000000e+00> : vector<8xf32>
    %27 = vector.multi_reduction <add>, %26, %cst_11 [1] : vector<8x8xf32> to vector<8xf32>
    %28 = vector.shape_cast %27 : vector<8xf32> to vector<8x1xf32>
    %29 = tpu.reciprocal %28 {approx = true} : vector<8x1xf32> -> vector<8x1xf32>
    %30 = vector.broadcast %29 : vector<8x1xf32> to vector<8x8xf32>
    %31 = arith.mulf %26, %30 : vector<8x8xf32>
    %32 = arith.truncf %31 : vector<8x8xf32> to vector<8x8xbf16>
    %c0_12 = arith.constant 0 : index
    %c0_13 = arith.constant 0 : index
    %33 = vector.load %arg19[%c0_12, %c0_13] : memref<8x32xbf16, #tpu.memory_space<vmem>>, vector<8x8xbf16>
    %cst_14 = arith.constant dense<0.000000e+00> : vector<8x8xf32>
    %34 = tpu.matmul %32, %33, %cst_14 {dimension_numbers = #tpu.dot_dimension_numbers<[1], [0], [0], [1], [0, 0, 1, 1], [], []>} : vector<8x8xbf16>, vector<8x8xbf16>, vector<8x8xf32> -> vector<8x8xf32>
    %35 = arith.truncf %34 : vector<8x8xf32> to vector<8x8xbf16>
    %c0_15 = arith.constant 0 : index
    %c0_16 = arith.constant 0 : index
    %36 = vector.load %arg20[%c0_15, %c0_16] : memref<8x32xbf16, #tpu.memory_space<vmem>>, vector<8x8xbf16>
    tpu.vector_store %arg20[%c0_15, %c0_16], %35 {strides = array<i32>} : memref<8x32xbf16, #tpu.memory_space<vmem>>, vector<8x8xbf16>,
    %37 = vector.extract_strided_slice %9 {offsets = [0, 8], sizes = [8, 8], strides = [1, 1]} : vector<8x32xbf16> to vector<8x8xbf16>
    %c0_17 = arith.constant 0 : index
    %c8 = arith.constant 8 : index
    %38 = vector.load %arg18[%c0_17, %c8] : memref<8x32xbf16, #tpu.memory_space<vmem>>, vector<8x8xbf16>
    %cst_18 = arith.constant dense<0.000000e+00> : vector<8x8xf32>
    %39 = tpu.matmul %37, %38, %cst_18 {dimension_numbers = #tpu.dot_dimension_numbers<[1], [1], [0], [0], [0, 0, 1, 0], [], []>} : vector<8x8xbf16>, vector<8x8xbf16>, vector<8x8xf32> -> vector<8x8xf32>
    %40 = arith.addf %39, %17 : vector<8x8xf32>
    %cst_19 = arith.constant dense<0xFF800000> : vector<8xf32>
    %41 = vector.multi_reduction <maximumf>, %40, %cst_19 [1] : vector<8x8xf32> to vector<8xf32>
    %42 = vector.shape_cast %41 : vector<8xf32> to vector<8x1xf32>
    %43 = vector.broadcast %42 : vector<8x1xf32> to vector<8x8xf32>
    %44 = arith.subf %40, %43 : vector<8x8xf32>
    %45 = math.exp %44 : vector<8x8xf32>
    %cst_20 = arith.constant dense<0.000000e+00> : vector<8xf32>
    %46 = vector.multi_reduction <add>, %45, %cst_20 [1] : vector<8x8xf32> to vector<8xf32>
    %47 = vector.shape_cast %46 : vector<8xf32> to vector<8x1xf32>
    %48 = tpu.reciprocal %47 {approx = true} : vector<8x1xf32> -> vector<8x1xf32>
    %49 = vector.broadcast %48 : vector<8x1xf32> to vector<8x8xf32>
    %50 = arith.mulf %45, %49 : vector<8x8xf32>
    %51 = arith.truncf %50 : vector<8x8xf32> to vector<8x8xbf16>
    %c0_21 = arith.constant 0 : index
    %c8_22 = arith.constant 8 : index
    %52 = vector.load %arg19[%c0_21, %c8_22] : memref<8x32xbf16, #tpu.memory_space<vmem>>, vector<8x8xbf16>
    %cst_23 = arith.constant dense<0.000000e+00> : vector<8x8xf32>
    %53 = tpu.matmul %51, %52, %cst_23 {dimension_numbers = #tpu.dot_dimension_numbers<[1], [0], [0], [1], [0, 0, 1, 1], [], []>} : vector<8x8xbf16>, vector<8x8xbf16>, vector<8x8xf32> -> vector<8x8xf32>
    %54 = arith.truncf %53 : vector<8x8xf32> to vector<8x8xbf16>
    %c0_24 = arith.constant 0 : index
    %c8_25 = arith.constant 8 : index
    %55 = vector.load %arg20[%c0_24, %c8_25] : memref<8x32xbf16, #tpu.memory_space<vmem>>, vector<8x8xbf16>
    tpu.vector_store %arg20[%c0_24, %c8_25], %54 {strides = array<i32>} : memref<8x32xbf16, #tpu.memory_space<vmem>>, vector<8x8xbf16>,
    %56 = vector.extract_strided_slice %9 {offsets = [0, 16], sizes = [8, 8], strides = [1, 1]} : vector<8x32xbf16> to vector<8x8xbf16>
    %c0_26 = arith.constant 0 : index
    %c16 = arith.constant 16 : index
    %57 = vector.load %arg18[%c0_26, %c16] : memref<8x32xbf16, #tpu.memory_space<vmem>>, vector<8x8xbf16>
    %cst_27 = arith.constant dense<0.000000e+00> : vector<8x8xf32>
    %58 = tpu.matmul %56, %57, %cst_27 {dimension_numbers = #tpu.dot_dimension_numbers<[1], [1], [0], [0], [0, 0, 1, 0], [], []>} : vector<8x8xbf16>, vector<8x8xbf16>, vector<8x8xf32> -> vector<8x8xf32>
    %59 = arith.addf %58, %17 : vector<8x8xf32>
    %cst_28 = arith.constant dense<0xFF800000> : vector<8xf32>
    %60 = vector.multi_reduction <maximumf>, %59, %cst_28 [1] : vector<8x8xf32> to vector<8xf32>
    %61 = vector.shape_cast %60 : vector<8xf32> to vector<8x1xf32>
    %62 = vector.broadcast %61 : vector<8x1xf32> to vector<8x8xf32>
    %63 = arith.subf %59, %62 : vector<8x8xf32>
    %64 = math.exp %63 : vector<8x8xf32>
    %cst_29 = arith.constant dense<0.000000e+00> : vector<8xf32>
    %65 = vector.multi_reduction <add>, %64, %cst_29 [1] : vector<8x8xf32> to vector<8xf32>
    %66 = vector.shape_cast %65 : vector<8xf32> to vector<8x1xf32>
    %67 = tpu.reciprocal %66 {approx = true} : vector<8x1xf32> -> vector<8x1xf32>
    %68 = vector.broadcast %67 : vector<8x1xf32> to vector<8x8xf32>
    %69 = arith.mulf %64, %68 : vector<8x8xf32>
    %70 = arith.truncf %69 : vector<8x8xf32> to vector<8x8xbf16>
    %c0_30 = arith.constant 0 : index
    %c16_31 = arith.constant 16 : index
    %71 = vector.load %arg19[%c0_30, %c16_31] : memref<8x32xbf16, #tpu.memory_space<vmem>>, vector<8x8xbf16>
    %cst_32 = arith.constant dense<0.000000e+00> : vector<8x8xf32>
    %72 = tpu.matmul %70, %71, %cst_32 {dimension_numbers = #tpu.dot_dimension_numbers<[1], [0], [0], [1], [0, 0, 1, 1], [], []>} : vector<8x8xbf16>, vector<8x8xbf16>, vector<8x8xf32> -> vector<8x8xf32>
    %73 = arith.truncf %72 : vector<8x8xf32> to vector<8x8xbf16>
    %c0_33 = arith.constant 0 : index
    %c16_34 = arith.constant 16 : index
    %74 = vector.load %arg20[%c0_33, %c16_34] : memref<8x32xbf16, #tpu.memory_space<vmem>>, vector<8x8xbf16>
    tpu.vector_store %arg20[%c0_33, %c16_34], %73 {strides = array<i32>} : memref<8x32xbf16, #tpu.memory_space<vmem>>, vector<8x8xbf16>,
    %75 = vector.extract_strided_slice %9 {offsets = [0, 24], sizes = [8, 8], strides = [1, 1]} : vector<8x32xbf16> to vector<8x8xbf16>
    %c0_35 = arith.constant 0 : index
    %c24 = arith.constant 24 : index
    %76 = vector.load %arg18[%c0_35, %c24] : memref<8x32xbf16, #tpu.memory_space<vmem>>, vector<8x8xbf16>
    %cst_36 = arith.constant dense<0.000000e+00> : vector<8x8xf32>
    %77 = tpu.matmul %75, %76, %cst_36 {dimension_numbers = #tpu.dot_dimension_numbers<[1], [1], [0], [0], [0, 0, 1, 0], [], []>} : vector<8x8xbf16>, vector<8x8xbf16>, vector<8x8xf32> -> vector<8x8xf32>
    %78 = arith.addf %77, %17 : vector<8x8xf32>
    %cst_37 = arith.constant dense<0xFF800000> : vector<8xf32>
    %79 = vector.multi_reduction <maximumf>, %78, %cst_37 [1] : vector<8x8xf32> to vector<8xf32>
    %80 = vector.shape_cast %79 : vector<8xf32> to vector<8x1xf32>
    %81 = vector.broadcast %80 : vector<8x1xf32> to vector<8x8xf32>
    %82 = arith.subf %78, %81 : vector<8x8xf32>
    %83 = math.exp %82 : vector<8x8xf32>
    %cst_38 = arith.constant dense<0.000000e+00> : vector<8xf32>
    %84 = vector.multi_reduction <add>, %83, %cst_38 [1] : vector<8x8xf32> to vector<8xf32>
    %85 = vector.shape_cast %84 : vector<8xf32> to vector<8x1xf32>
    %86 = tpu.reciprocal %85 {approx = true} : vector<8x1xf32> -> vector<8x1xf32>
    %87 = vector.broadcast %86 : vector<8x1xf32> to vector<8x8xf32>
    %88 = arith.mulf %83, %87 : vector<8x8xf32>
    %89 = arith.truncf %88 : vector<8x8xf32> to vector<8x8xbf16>
    %c0_39 = arith.constant 0 : index
    %c24_40 = arith.constant 24 : index
    %90 = vector.load %arg19[%c0_39, %c24_40] : memref<8x32xbf16, #tpu.memory_space<vmem>>, vector<8x8xbf16>
    %cst_41 = arith.constant dense<0.000000e+00> : vector<8x8xf32>
    %91 = tpu.matmul %89, %90, %cst_41 {dimension_numbers = #tpu.dot_dimension_numbers<[1], [0], [0], [1], [0, 0, 1, 1], [], []>} : vector<8x8xbf16>, vector<8x8xbf16>, vector<8x8xf32> -> vector<8x8xf32>
    %92 = arith.truncf %91 : vector<8x8xf32> to vector<8x8xbf16>
    %c0_42 = arith.constant 0 : index
    %c24_43 = arith.constant 24 : index
    %93 = vector.load %arg20[%c0_42, %c24_43] : memref<8x32xbf16, #tpu.memory_space<vmem>>, vector<8x8xbf16>
    tpu.vector_store %arg20[%c0_42, %c24_43], %92 {strides = array<i32>} : memref<8x32xbf16, #tpu.memory_space<vmem>>, vector<8x8xbf16>,
    %c0_44 = arith.constant 0 : index
    %c0_45 = arith.constant 0 : index
    %94 = vector.load %arg20[%c0_44, %c0_45] : memref<8x32xbf16, #tpu.memory_space<vmem>>, vector<8x32xbf16>
    %c0_46 = arith.constant 0 : index
    %c0_47 = arith.constant 0 : index
    %95 = vector.load %arg6[%c0_46, %c0_47] : memref<32x32xbf16, #tpu.memory_space<vmem>>, vector<32x32xbf16>
    %cst_48 = arith.constant dense<0.000000e+00> : vector<8x32xf32>
    %96 = tpu.matmul %94, %95, %cst_48 {dimension_numbers = #tpu.dot_dimension_numbers<[1], [0], [0], [1], [0, 0, 1, 1], [], []>} : vector<8x32xbf16>, vector<32x32xbf16>, vector<8x32xf32> -> vector<8x32xf32>
    %c0_49 = arith.constant 0 : index
    %c0_50 = arith.constant 0 : index
    %97 = vector.load %arg7[%c0_49, %c0_50] : memref<1x32xf32, #tpu.memory_space<vmem>>, vector<1x32xf32>
    %98 = vector.shape_cast %97 : vector<1x32xf32> to vector<32xf32>
    %99 = vector.shape_cast %98 : vector<32xf32> to vector<1x32xf32>
    %100 = vector.broadcast %99 : vector<1x32xf32> to vector<8x32xf32>
    %101 = arith.addf %96, %100 : vector<8x32xf32>
    %102 = arith.extf %7 : vector<8x32xbf16> to vector<8x32xf32>
    %103 = arith.addf %102, %101 : vector<8x32xf32>
    %c0_51 = arith.constant 0 : index
    %c0_52 = arith.constant 0 : index
    %104 = vector.load %arg8[%c0_51, %c0_52] : memref<1x32xf32, #tpu.memory_space<vmem>>, vector<1x32xf32>
    %105 = vector.shape_cast %104 : vector<1x32xf32> to vector<32xf32>
    %c0_53 = arith.constant 0 : index
    %c0_54 = arith.constant 0 : index
    %106 = vector.load %arg9[%c0_53, %c0_54] : memref<1x32xf32, #tpu.memory_space<vmem>>, vector<1x32xf32>
    %107 = vector.shape_cast %106 : vector<1x32xf32> to vector<32xf32>
    %cst_55 = arith.constant dense<0.000000e+00> : vector<8xf32>
    %108 = vector.multi_reduction <add>, %103, %cst_55 [1] : vector<8x32xf32> to vector<8xf32>
    %109 = vector.shape_cast %108 : vector<8xf32> to vector<8x1xf32>
    %cst_56 = arith.constant 3.200000e+01 : f32
    %110 = vector.broadcast %cst_56 : f32 to vector<8x1xf32>
    %111 = arith.divf %109, %110 : vector<8x1xf32>
    %112 = vector.broadcast %111 : vector<8x1xf32> to vector<8x32xf32>
    %113 = arith.subf %103, %112 : vector<8x32xf32>
    %114 = arith.mulf %113, %113 : vector<8x32xf32>
    %cst_57 = arith.constant dense<0.000000e+00> : vector<8xf32>
    %115 = vector.multi_reduction <add>, %114, %cst_57 [1] : vector<8x32xf32> to vector<8xf32>
    %116 = vector.shape_cast %115 : vector<8xf32> to vector<8x1xf32>
    %cst_58 = arith.constant 3.200000e+01 : f32
    %117 = vector.broadcast %cst_58 : f32 to vector<8x1xf32>
    %118 = arith.divf %116, %117 : vector<8x1xf32>
    %119 = vector.broadcast %111 : vector<8x1xf32> to vector<8x32xf32>
    %120 = arith.subf %103, %119 : vector<8x32xf32>
    %cst_59 = arith.constant 9.99999974E-6 : f32
    %121 = vector.broadcast %cst_59 : f32 to vector<8x1xf32>
    %122 = arith.addf %118, %121 : vector<8x1xf32>
    %123 = math.rsqrt %122 : vector<8x1xf32>
    %124 = vector.broadcast %123 : vector<8x1xf32> to vector<8x32xf32>
    %125 = arith.mulf %120, %124 : vector<8x32xf32>
    %126 = vector.shape_cast %105 : vector<32xf32> to vector<1x32xf32>
    %127 = vector.broadcast %126 : vector<1x32xf32> to vector<8x32xf32>
    %128 = arith.mulf %125, %127 : vector<8x32xf32>
    %129 = vector.shape_cast %107 : vector<32xf32> to vector<1x32xf32>
    %130 = vector.broadcast %129 : vector<1x32xf32> to vector<8x32xf32>
    %131 = arith.addf %128, %130 : vector<8x32xf32>
    %132 = arith.truncf %131 : vector<8x32xf32> to vector<8x32xbf16>
    %c0_60 = arith.constant 0 : index
    %c0_61 = arith.constant 0 : index
    %133 = vector.load %arg10[%c0_60, %c0_61] : memref<32x64xbf16, #tpu.memory_space<vmem>>, vector<32x64xbf16>
    %cst_62 = arith.constant dense<0.000000e+00> : vector<8x64xf32>
    %134 = tpu.matmul %132, %133, %cst_62 {dimension_numbers = #tpu.dot_dimension_numbers<[1], [0], [0], [1], [0, 0, 1, 1], [], []>} : vector<8x32xbf16>, vector<32x64xbf16>, vector<8x64xf32> -> vector<8x64xf32>
    %c0_63 = arith.constant 0 : index
    %c0_64 = arith.constant 0 : index
    %135 = vector.load %arg11[%c0_63, %c0_64] : memref<1x64xf32, #tpu.memory_space<vmem>>, vector<1x64xf32>
    %136 = vector.shape_cast %135 : vector<1x64xf32> to vector<64xf32>
    %137 = vector.shape_cast %136 : vector<64xf32> to vector<1x64xf32>
    %138 = vector.broadcast %137 : vector<1x64xf32> to vector<8x64xf32>
    %139 = arith.addf %134, %138 : vector<8x64xf32>
    %140 = arith.mulf %139, %139 : vector<8x64xf32>
    %141 = arith.mulf %139, %140 : vector<8x64xf32>
    %cst_65 = arith.constant 4.471500e-02 : f32
    %142 = vector.broadcast %cst_65 : f32 to vector<8x64xf32>
    %143 = arith.mulf %142, %141 : vector<8x64xf32>
    %144 = arith.addf %139, %143 : vector<8x64xf32>
    %cst_66 = arith.constant 0.797884583 : f32
    %145 = vector.broadcast %cst_66 : f32 to vector<8x64xf32>
    %146 = arith.mulf %145, %144 : vector<8x64xf32>
    %147 = math.tanh %146 : vector<8x64xf32>
    %cst_67 = arith.constant 1.000000e+00 : f32
    %148 = vector.broadcast %cst_67 : f32 to vector<8x64xf32>
    %149 = arith.addf %148, %147 : vector<8x64xf32>
    %cst_68 = arith.constant 5.000000e-01 : f32
    %150 = vector.broadcast %cst_68 : f32 to vector<8x64xf32>
    %151 = arith.mulf %150, %149 : vector<8x64xf32>
    %152 = arith.mulf %139, %151 : vector<8x64xf32>
    %153 = arith.truncf %152 : vector<8x64xf32> to vector<8x64xbf16>
    %c0_69 = arith.constant 0 : index
    %c0_70 = arith.constant 0 : index
    %154 = vector.load %arg12[%c0_69, %c0_70] : memref<64x32xbf16, #tpu.memory_space<vmem>>, vector<64x32xbf16>
    %cst_71 = arith.constant dense<0.000000e+00> : vector<8x32xf32>
    %155 = tpu.matmul %153, %154, %cst_71 {dimension_numbers = #tpu.dot_dimension_numbers<[1], [0], [0], [1], [0, 0, 1, 1], [], []>} : vector<8x64xbf16>, vector<64x32xbf16>, vector<8x32xf32> -> vector<8x32xf32>
    %c0_72 = arith.constant 0 : index
    %c0_73 = arith.constant 0 : index
    %156 = vector.load %arg13[%c0_72, %c0_73] : memref<1x32xf32, #tpu.memory_space<vmem>>, vector<1x32xf32>
    %157 = vector.shape_cast %156 : vector<1x32xf32> to vector<32xf32>
    %158 = vector.shape_cast %157 : vector<32xf32> to vector<1x32xf32>
    %159 = vector.broadcast %158 : vector<1x32xf32> to vector<8x32xf32>
    %160 = arith.addf %155, %159 : vector<8x32xf32>
    %161 = arith.addf %131, %160 : vector<8x32xf32>
    %c0_74 = arith.constant 0 : index
    %c0_75 = arith.constant 0 : index
    %162 = vector.load %arg14[%c0_74, %c0_75] : memref<1x32xf32, #tpu.memory_space<vmem>>, vector<1x32xf32>
    %163 = vector.shape_cast %162 : vector<1x32xf32> to vector<32xf32>
    %c0_76 = arith.constant 0 : index
    %c0_77 = arith.constant 0 : index
    %164 = vector.load %arg15[%c0_76, %c0_77] : memref<1x32xf32, #tpu.memory_space<vmem>>, vector<1x32xf32>
    %165 = vector.shape_cast %164 : vector<1x32xf32> to vector<32xf32>
    %cst_78 = arith.constant dense<0.000000e+00> : vector<8xf32>
    %166 = vector.multi_reduction <add>, %161, %cst_78 [1] : vector<8x32xf32> to vector<8xf32>
    %167 = vector.shape_cast %166 : vector<8xf32> to vector<8x1xf32>
    %cst_79 = arith.constant 3.200000e+01 : f32
    %168 = vector.broadcast %cst_79 : f32 to vector<8x1xf32>
    %169 = arith.divf %167, %168 : vector<8x1xf32>
    %170 = vector.broadcast %169 : vector<8x1xf32> to vector<8x32xf32>
    %171 = arith.subf %161, %170 : vector<8x32xf32>
    %172 = arith.mulf %171, %171 : vector<8x32xf32>
    %cst_80 = arith.constant dense<0.000000e+00> : vector<8xf32>
    %173 = vector.multi_reduction <add>, %172, %cst_80 [1] : vector<8x32xf32> to vector<8xf32>
    %174 = vector.shape_cast %173 : vector<8xf32> to vector<8x1xf32>
    %cst_81 = arith.constant 3.200000e+01 : f32
    %175 = vector.broadcast %cst_81 : f32 to vector<8x1xf32>
    %176 = arith.divf %174, %175 : vector<8x1xf32>
    %177 = vector.broadcast %169 : vector<8x1xf32> to vector<8x32xf32>
    %178 = arith.subf %161, %177 : vector<8x32xf32>
    %cst_82 = arith.constant 9.99999974E-6 : f32
    %179 = vector.broadcast %cst_82 : f32 to vector<8x1xf32>
    %180 = arith.addf %176, %179 : vector<8x1xf32>
    %181 = math.rsqrt %180 : vector<8x1xf32>
    %182 = vector.broadcast %181 : vector<8x1xf32> to vector<8x32xf32>
    %183 = arith.mulf %178, %182 : vector<8x32xf32>
    %184 = vector.shape_cast %163 : vector<32xf32> to vector<1x32xf32>
    %185 = vector.broadcast %184 : vector<1x32xf32> to vector<8x32xf32>
    %186 = arith.mulf %183, %185 : vector<8x32xf32>
    %187 = vector.shape_cast %165 : vector<32xf32> to vector<1x32xf32>
    %188 = vector.broadcast %187 : vector<1x32xf32> to vector<8x32xf32>
    %189 = arith.addf %186, %188 : vector<8x32xf32>
    %190 = arith.truncf %189 : vector<8x32xf32> to vector<8x32xbf16>
    %c0_83 = arith.constant 0 : index
    %c0_84 = arith.constant 0 : index
    %c0_85 = arith.constant 0 : index
    %191 = vector.load %arg16[%c0_83, %c0_84, %c0_85] : memref<1x8x32xbf16, #tpu.memory_space<vmem>>, vector<1x8x32xbf16>
    %192 = vector.shape_cast %191 : vector<1x8x32xbf16> to vector<8x32xbf16>
    %193 = vector.shape_cast %190 : vector<8x32xbf16> to vector<1x8x32xbf16>
    tpu.vector_store %arg16[%c0_83, %c0_84, %c0_85], %193 {strides = array<i32>} : memref<1x8x32xbf16, #tpu.memory_space<vmem>>, vector<1x8x32xbf16>,
    return
  }
  func.func @transform_0(%arg0: i32, %arg1: i32) -> (i32, i32, i32) {
    %c0_i32 = arith.constant 0 : i32
    %c0_i32_0 = arith.constant 0 : i32
    %c0_i32_1 = arith.constant 0 : i32
    return %arg0, %c0_i32, %c0_i32_0 : i32, i32, i32
  }
  func.func @transform_1(%arg0: i32, %arg1: i32) -> (i32, i32, i32) {
    %c0_i32 = arith.constant 0 : i32
    %c0_i32_0 = arith.constant 0 : i32
    %c0_i32_1 = arith.constant 0 : i32
    return %arg0, %c0_i32, %c0_i32_0 : i32, i32, i32
  }
  func.func @transform_2(%arg0: i32, %arg1: i32) -> (i32, i32) {
    %c0_i32 = arith.constant 0 : i32
    %c0_i32_0 = arith.constant 0 : i32
    %c0_i32_1 = arith.constant 0 : i32
    return %c0_i32, %c0_i32_0 : i32, i32
  }
  func.func @transform_3(%arg0: i32, %arg1: i32) -> (i32, i32) {
    %c0_i32 = arith.constant 0 : i32
    %c0_i32_0 = arith.constant 0 : i32
    %c0_i32_1 = arith.constant 0 : i32
    return %c0_i32, %c0_i32_0 : i32, i32
  }
  func.func @transform_4(%arg0: i32, %arg1: i32) -> (i32, i32) {
    %c0_i32 = arith.constant 0 : i32
    %c0_i32_0 = arith.constant 0 : i32
    %c0_i32_1 = arith.constant 0 : i32
    return %c0_i32, %c0_i32_0 : i32, i32
  }
  func.func @transform_5(%arg0: i32, %arg1: i32) -> (i32, i32) {
    %c0_i32 = arith.constant 0 : i32
    %c0_i32_0 = arith.constant 0 : i32
    %c0_i32_1 = arith.constant 0 : i32
    return %c0_i32, %c0_i32_0 : i32, i32
  }
  func.func @transform_6(%arg0: i32, %arg1: i32) -> (i32, i32) {
    %c0_i32 = arith.constant 0 : i32
    %c0_i32_0 = arith.constant 0 : i32
    %c0_i32_1 = arith.constant 0 : i32
    return %c0_i32, %c0_i32_0 : i32, i32
  }
  func.func @transform_7(%arg0: i32, %arg1: i32) -> (i32, i32) {
    %c0_i32 = arith.constant 0 : i32
    %c0_i32_0 = arith.constant 0 : i32
    %c0_i32_1 = arith.constant 0 : i32
    return %c0_i32, %c0_i32_0 : i32, i32
  }
  func.func @transform_8(%arg0: i32, %arg1: i32) -> (i32, i32) {
    %c0_i32 = arith.constant 0 : i32
    %c0_i32_0 = arith.constant 0 : i32
    %c0_i32_1 = arith.constant 0 : i32
    return %c0_i32, %c0_i32_0 : i32, i32
  }
  func.func @transform_9(%arg0: i32, %arg1: i32) -> (i32, i32) {
    %c0_i32 = arith.constant 0 : i32
    %c0_i32_0 = arith.constant 0 : i32
    %c0_i32_1 = arith.constant 0 : i32
    return %c0_i32, %c0_i32_0 : i32, i32
  }
  func.func @transform_10(%arg0: i32, %arg1: i32) -> (i32, i32) {
    %c0_i32 = arith.constant 0 : i32
    %c0_i32_0 = arith.constant 0 : i32
    %c0_i32_1 = arith.constant 0 : i32
    return %c0_i32, %c0_i32_0 : i32, i32
  }
  func.func @transform_11(%arg0: i32, %arg1: i32) -> (i32, i32) {
    %c0_i32 = arith.constant 0 : i32
    %c0_i32_0 = arith.constant 0 : i32
    %c0_i32_1 = arith.constant 0 : i32
    return %c0_i32, %c0_i32_0 : i32, i32
  }
  func.func @transform_12(%arg0: i32, %arg1: i32) -> (i32, i32) {
    %c0_i32 = arith.constant 0 : i32
    %c0_i32_0 = arith.constant 0 : i32
    %c0_i32_1 = arith.constant 0 : i32
    return %c0_i32, %c0_i32_0 : i32, i32
  }
  func.func @transform_13(%arg0: i32, %arg1: i32) -> (i32, i32) {
    %c0_i32 = arith.constant 0 : i32
    %c0_i32_0 = arith.constant 0 : i32
    %c0_i32_1 = arith.constant 0 : i32
    return %c0_i32, %c0_i32_0 : i32, i32
  }
  func.func @transform_14(%arg0: i32, %arg1: i32) -> (i32, i32, i32) {
    %c0_i32 = arith.constant 0 : i32
    %c0_i32_0 = arith.constant 0 : i32
    return %arg0, %arg1, %c0_i32 : i32, i32, i32
  }
}

</mosaic_0001>

<llo_original>
// kernel: tpu_custom_call.1
$region0: #{tpu_custom_call.1}
  #allocation0 [shape = 'u32[]', space=smem, size = 0x4, offset = 0x4, fixed_abs, tag = 'smem constant byte address 0x4 - core index']
  #allocation1 [shape = 'u32[144,128]{1,0:T(1,128)}', space=vmem, size = 0x12000, scoped, tag = 'internal scratch']
  #allocation2 [shape = 'bf16[8,32]{1,0:T(8,128)(2,1)}', space=vmem, size = 0x800, scoped, tag = 'scratch operand']
  #allocation3 [shape = 'bf16[8,32]{1,0:T(8,128)(2,1)}', space=vmem, size = 0x800, scoped, tag = 'scratch operand']
  #allocation4 [shape = 'bf16[8,32]{1,0:T(8,128)(2,1)}', space=vmem, size = 0x800, scoped, tag = 'scratch operand']
  #allocation5 [shape = 'bf16[8,32]{1,0:T(8,128)(2,1)}', space=vmem, size = 0x800, scoped, tag = 'scratch operand']
  %s0 = inlined_call_operand.hbm [shape: bf16[2,8,32], index: 0, kind: input, shape index: {}]
  %s1 = inlined_call_operand.vmem [shape: f32[2,1,8], index: 1, kind: input, shape index: {}]
  %s2 = inlined_call_operand.vmem [shape: bf16[32,96], index: 2, kind: input, shape index: {}]
  %s3 = inlined_call_operand.vmem [shape: f32[1,96], index: 3, kind: input, shape index: {}]
  %s4 = inlined_call_operand.vmem [shape: bf16[32,32], index: 4, kind: input, shape index: {}]
  %s5 = inlined_call_operand.vmem [shape: f32[1,32], index: 5, kind: input, shape index: {}]
  %s6 = inlined_call_operand.vmem [shape: f32[1,32], index: 6, kind: input, shape index: {}]
  %s7 = inlined_call_operand.vmem [shape: f32[1,32], index: 7, kind: input, shape index: {}]
  %s8 = inlined_call_operand.vmem [shape: bf16[32,64], index: 8, kind: input, shape index: {}]
  %s9 = inlined_call_operand.vmem [shape: f32[1,64], index: 9, kind: input, shape index: {}]
  %s10 = inlined_call_operand.vmem [shape: bf16[64,32], index: 10, kind: input, shape index: {}]
  %s11 = inlined_call_operand.vmem [shape: f32[1,32], index: 11, kind: input, shape index: {}]
  %s12 = inlined_call_operand.vmem [shape: f32[1,32], index: 12, kind: input, shape index: {}]
  %s13 = inlined_call_operand.vmem [shape: f32[1,32], index: 13, kind: input, shape index: {}]
  %s14 = inlined_call_operand.hbm [shape: bf16[2,8,32], index: 14, kind: output, shape index: {}]
  %s15 = sld [smem:[#allocation0]]
  $region97: #{tpu_custom_call.1} parent=0
    _
  %s17 = ssub.s32 1, %s15
  %s18 = scalar_select 0, %s17, %s15
  $region1: #{tpu_custom_call.1} parent=0
    #allocation6 [shape = 'u8[4096]{0}', space=vmem, size = 0x1000, scoped, tag = 'input window, operand 0']
    #allocation7 [shape = 's32[2]{0}', space=sflag, size = 0x8, scoped, tag = 'scoped memory for tpu_custom_call.1']
    #allocation8 [shape = 's32[2]{0}', space=sflag, size = 0x8, scoped, tag = 'scoped memory for tpu_custom_call.1']
    #allocation9 [shape = 'u8[4096]{0}', space=vmem, size = 0x1000, scoped, tag = 'output window, operand 0']
    %19 = vsyncpa [#allocation7], 0
    %s20 = scalar_lea.sflag [#allocation7], 1
    %21 = vsyncpa %s20, 0
    %22 = vsyncpa [#allocation8], 0
    %s23 = scalar_lea.sflag [#allocation8], 1
    %24 = vsyncpa %s23, 0
    loop: start=0, step=1, limit=4
    $region2: #{tpu_custom_call.1} parent=1 // loop_pre_header
      _
    $region3: #{tpu_custom_call.1} parent=1 // loop_header
      %s26 = sphi 0, %s30
      %p27 = scmp.ge.s32.totalorder %s26, 4
      %s33 = sphi 0, %s45
      %s34 = sphi 0, %s41
      %s35 = sphi 0, %s33
      %s36 = sphi 0, %s34
      %s37 = sphi 0, %s35
      %s38 = sphi 0, %s36
      %s48 = sphi 0, %s50
      %s51 = sphi 0, %s48
      %s52 = sphi 0, %s51
      %s68 = sphi 0, %s52
      %s74 = sphi 0, %s76
      %s77 = sphi 0, %s74
      %s78 = sphi 0, %s77
      %s94 = sphi 0, %s78
      %s98 = sphi 0, %s98
      %s100 = sphi 0, %s98
      %s101 = sphi 0, %s100
      %s115 = sphi 0, %s101
      %s119 = sphi 0, %s119
      %s121 = sphi 0, %s119
      %s122 = sphi 0, %s121
      %s136 = sphi 0, %s122
      %s140 = sphi 0, %s140
      %s142 = sphi 0, %s140
      %s143 = sphi 0, %s142
      %s157 = sphi 0, %s143
      %s161 = sphi 0, %s161
      %s163 = sphi 0, %s161
      %s164 = sphi 0, %s163
      %s178 = sphi 0, %s164
      %s182 = sphi 0, %s182
      %s184 = sphi 0, %s182
      %s185 = sphi 0, %s184
      %s199 = sphi 0, %s185
      %s203 = sphi 0, %s203
      %s205 = sphi 0, %s203
      %s206 = sphi 0, %s205
      %s220 = sphi 0, %s206
      %s224 = sphi 0, %s224
      %s226 = sphi 0, %s224
      %s227 = sphi 0, %s226
      %s241 = sphi 0, %s227
      %s245 = sphi 0, %s245
      %s247 = sphi 0, %s245
      %s248 = sphi 0, %s247
      %s262 = sphi 0, %s248
      %s266 = sphi 0, %s266
      %s268 = sphi 0, %s266
      %s269 = sphi 0, %s268
      %s283 = sphi 0, %s269
      %s287 = sphi 0, %s287
      %s289 = sphi 0, %s287
      %s290 = sphi 0, %s289
      %s304 = sphi 0, %s290
      %s308 = sphi 0, %s308
      %s310 = sphi 0, %s308
      %s311 = sphi 0, %s310
      %s325 = sphi 0, %s311
      %s329 = sphi 0, %s329
      %s331 = sphi 0, %s329
      %s332 = sphi 0, %s331
      %s346 = sphi 0, %s332
      %s354 = sphi 0, %s356
      %s357 = sphi 0, %s354
      %s358 = sphi 0, %s357
      %s374 = sphi 0, %s358
    $region4: #{tpu_custom_call.1} parent=1 // loop_header_branch
      %29 = sbr.rel (%p27) target = $region8
    $region5: #{tpu_custom_call.1} parent=1 // loop_body
      %s31 = ssub.s32 %s26, 1
      %s32 = ssub.s32 %s26, 2
      %s39 = sadd.s32 1, %s34
      %p40 = scmp.ge.s32.totalorder %s39, 1
      %s41 = scalar_select %p40, 0, %s39
      %s42 = sadd.s32 1, %s33
      %s43 = scalar_select %p40, %s42, %s33
      %p44 = scmp.ge.s32.totalorder %s43, 2
      %s45 = scalar_select %p44, 0, %s43
      %s46 = ssub.s32 %s33, %s45
      %p47 = scmp.eq.s32.totalorder %s46, 0
      %s49 = sadd.s32 %s48, 1
      %s50 = scalar_select %p47, %s48, %s49
      %p53 = pneg %p47
      %p54 = scmp.eq.s32.totalorder %s26, 1
      %p55 = por %p53, %p54
      %p56 = scmp.ne.s32.totalorder %s48, %s51
      %p57 = scmp.eq.s32.totalorder %s26, 0
      %p58 = por %p56, %p57
      %p59 = scmp.ne.s32.totalorder %s48, %s51
      %p60 = scmp.eq.s32.totalorder %s31, 1
      %p61 = por %p59, %p60
      %p62 = scmp.ne.s32.totalorder %s51, %s52
      %p63 = scmp.eq.s32.totalorder %s31, 0
      %p64 = por %p62, %p63
      %p65 = scmp.ne.s32.totalorder %s51, %s52
      %p66 = scmp.eq.s32.totalorder %s32, 1
      %p67 = por %p65, %p66
      %p69 = scmp.ne.s32.totalorder %s52, %s68
      %p70 = scmp.eq.s32.totalorder %s32, 0
      %p71 = por %p69, %p70
      %s72 = ssub.s32 %s33, %s45
      %p73 = scmp.eq.s32.totalorder %s72, 0
      %s75 = sadd.s32 %s74, 1
      %s76 = scalar_select %p73, %s74, %s75
      %p79 = pneg %p73
      %p80 = scmp.eq.s32.totalorder %s26, 1
      %p81 = por %p79, %p80
      %p82 = scmp.ne.s32.totalorder %s74, %s77
      %p83 = scmp.eq.s32.totalorder %s26, 0
      %p84 = por %p82, %p83
      %p85 = scmp.ne.s32.totalorder %s74, %s77
      %p86 = scmp.eq.s32.totalorder %s31, 1
      %p87 = por %p85, %p86
      %p88 = scmp.ne.s32.totalorder %s77, %s78
      %p89 = scmp.eq.s32.totalorder %s31, 0
      %p90 = por %p88, %p89
      %p91 = scmp.ne.s32.totalorder %s77, %s78
      %p92 = scmp.eq.s32.totalorder %s32, 1
      %p93 = por %p91, %p92
      %p95 = scmp.ne.s32.totalorder %s78, %s94
      %p96 = scmp.eq.s32.totalorder %s32, 0
      %p97 = por %p95, %p96
      %s99 = sadd.s32 %s98, 1
      %p102 = scmp.eq.s32.totalorder %s26, 1
      %p103 = scmp.ne.s32.totalorder %s98, %s100
      %p104 = scmp.eq.s32.totalorder %s26, 0
      %p105 = por %p103, %p104
      %p106 = scmp.ne.s32.totalorder %s98, %s100
      %p107 = scmp.eq.s32.totalorder %s31, 1
      %p108 = por %p106, %p107
      %p109 = scmp.ne.s32.totalorder %s100, %s101
      %p110 = scmp.eq.s32.totalorder %s31, 0
      %p111 = por %p109, %p110
      %p112 = scmp.ne.s32.totalorder %s100, %s101
      %p113 = scmp.eq.s32.totalorder %s32, 1
      %p114 = por %p112, %p113
      %p116 = scmp.ne.s32.totalorder %s101, %s115
      %p117 = scmp.eq.s32.totalorder %s32, 0
      %p118 = por %p116, %p117
      %s120 = sadd.s32 %s119, 1
      %p123 = scmp.eq.s32.totalorder %s26, 1
      %p124 = scmp.ne.s32.totalorder %s119, %s121
      %p125 = scmp.eq.s32.totalorder %s26, 0
      %p126 = por %p124, %p125
      %p127 = scmp.ne.s32.totalorder %s119, %s121
      %p128 = scmp.eq.s32.totalorder %s31, 1
      %p129 = por %p127, %p128
      %p130 = scmp.ne.s32.totalorder %s121, %s122
      %p131 = scmp.eq.s32.totalorder %s31, 0
      %p132 = por %p130, %p131
      %p133 = scmp.ne.s32.totalorder %s121, %s122
      %p134 = scmp.eq.s32.totalorder %s32, 1
      %p135 = por %p133, %p134
      %p137 = scmp.ne.s32.totalorder %s122, %s136
      %p138 = scmp.eq.s32.totalorder %s32, 0
      %p139 = por %p137, %p138
      %s141 = sadd.s32 %s140, 1
      %p144 = scmp.eq.s32.totalorder %s26, 1
      %p145 = scmp.ne.s32.totalorder %s140, %s142
      %p146 = scmp.eq.s32.totalorder %s26, 0
      %p147 = por %p145, %p146
      %p148 = scmp.ne.s32.totalorder %s140, %s142
      %p149 = scmp.eq.s32.totalorder %s31, 1
      %p150 = por %p148, %p149
      %p151 = scmp.ne.s32.totalorder %s142, %s143
      %p152 = scmp.eq.s32.totalorder %s31, 0
      %p153 = por %p151, %p152
      %p154 = scmp.ne.s32.totalorder %s142, %s143
      %p155 = scmp.eq.s32.totalorder %s32, 1
      %p156 = por %p154, %p155
      %p158 = scmp.ne.s32.totalorder %s143, %s157
      %p159 = scmp.eq.s32.totalorder %s32, 0
      %p160 = por %p158, %p159
      %s162 = sadd.s32 %s161, 1
      %p165 = scmp.eq.s32.totalorder %s26, 1
      %p166 = scmp.ne.s32.totalorder %s161, %s163
      %p167 = scmp.eq.s32.totalorder %s26, 0
      %p168 = por %p166, %p167
      %p169 = scmp.ne.s32.totalorder %s161, %s163
      %p170 = scmp.eq.s32.totalorder %s31, 1
      %p171 = por %p169, %p170
      %p172 = scmp.ne.s32.totalorder %s163, %s164
      %p173 = scmp.eq.s32.totalorder %s31, 0
      %p174 = por %p172, %p173
      %p175 = scmp.ne.s32.totalorder %s163, %s164
      %p176 = scmp.eq.s32.totalorder %s32, 1
      %p177 = por %p175, %p176
      %p179 = scmp.ne.s32.totalorder %s164, %s178
      %p180 = scmp.eq.s32.totalorder %s32, 0
      %p181 = por %p179, %p180
      %s183 = sadd.s32 %s182, 1
      %p186 = scmp.eq.s32.totalorder %s26, 1
      %p187 = scmp.ne.s32.totalorder %s182, %s184
      %p188 = scmp.eq.s32.totalorder %s26, 0
      %p189 = por %p187, %p188
      %p190 = scmp.ne.s32.totalorder %s182, %s184
      %p191 = scmp.eq.s32.totalorder %s31, 1
      %p192 = por %p190, %p191
      %p193 = scmp.ne.s32.totalorder %s184, %s185
      %p194 = scmp.eq.s32.totalorder %s31, 0
      %p195 = por %p193, %p194
      %p196 = scmp.ne.s32.totalorder %s184, %s185
      %p197 = scmp.eq.s32.totalorder %s32, 1
      %p198 = por %p196, %p197
      %p200 = scmp.ne.s32.totalorder %s185, %s199
      %p201 = scmp.eq.s32.totalorder %s32, 0
      %p202 = por %p200, %p201
      %s204 = sadd.s32 %s203, 1
      %p207 = scmp.eq.s32.totalorder %s26, 1
      %p208 = scmp.ne.s32.totalorder %s203, %s205
      %p209 = scmp.eq.s32.totalorder %s26, 0
      %p210 = por %p208, %p209
      %p211 = scmp.ne.s32.totalorder %s203, %s205
      %p212 = scmp.eq.s32.totalorder %s31, 1
      %p213 = por %p211, %p212
      %p214 = scmp.ne.s32.totalorder %s205, %s206
      %p215 = scmp.eq.s32.totalorder %s31, 0
      %p216 = por %p214, %p215
      %p217 = scmp.ne.s32.totalorder %s205, %s206
      %p218 = scmp.eq.s32.totalorder %s32, 1
      %p219 = por %p217, %p218
      %p221 = scmp.ne.s32.totalorder %s206, %s220
      %p222 = scmp.eq.s32.totalorder %s32, 0
      %p223 = por %p221, %p222
      %s225 = sadd.s32 %s224, 1
      %p228 = scmp.eq.s32.totalorder %s26, 1
      %p229 = scmp.ne.s32.totalorder %s224, %s226
      %p230 = scmp.eq.s32.totalorder %s26, 0
      %p231 = por %p229, %p230
      %p232 = scmp.ne.s32.totalorder %s224, %s226
      %p233 = scmp.eq.s32.totalorder %s31, 1
      %p234 = por %p232, %p233
      %p235 = scmp.ne.s32.totalorder %s226, %s227
      %p236 = scmp.eq.s32.totalorder %s31, 0
      %p237 = por %p235, %p236
      %p238 = scmp.ne.s32.totalorder %s226, %s227
      %p239 = scmp.eq.s32.totalorder %s32, 1
      %p240 = por %p238, %p239
      %p242 = scmp.ne.s32.totalorder %s227, %s241
      %p243 = scmp.eq.s32.totalorder %s32, 0
      %p244 = por %p242, %p243
      %s246 = sadd.s32 %s245, 1
      %p249 = scmp.eq.s32.totalorder %s26, 1
      %p250 = scmp.ne.s32.totalorder %s245, %s247
      %p251 = scmp.eq.s32.totalorder %s26, 0
      %p252 = por %p250, %p251
      %p253 = scmp.ne.s32.totalorder %s245, %s247
      %p254 = scmp.eq.s32.totalorder %s31, 1
      %p255 = por %p253, %p254
      %p256 = scmp.ne.s32.totalorder %s247, %s248
      %p257 = scmp.eq.s32.totalorder %s31, 0
      %p258 = por %p256, %p257
      %p259 = scmp.ne.s32.totalorder %s247, %s248
      %p260 = scmp.eq.s32.totalorder %s32, 1
      %p261 = por %p259, %p260
      %p263 = scmp.ne.s32.totalorder %s248, %s262
      %p264 = scmp.eq.s32.totalorder %s32, 0
      %p265 = por %p263, %p264
      %s267 = sadd.s32 %s266, 1
      %p270 = scmp.eq.s32.totalorder %s26, 1
      %p271 = scmp.ne.s32.totalorder %s266, %s268
      %p272 = scmp.eq.s32.totalorder %s26, 0
      %p273 = por %p271, %p272
      %p274 = scmp.ne.s32.totalorder %s266, %s268
      %p275 = scmp.eq.s32.totalorder %s31, 1
      %p276 = por %p274, %p275
      %p277 = scmp.ne.s32.totalorder %s268, %s269
      %p278 = scmp.eq.s32.totalorder %s31, 0
      %p279 = por %p277, %p278
      %p280 = scmp.ne.s32.totalorder %s268, %s269
      %p281 = scmp.eq.s32.totalorder %s32, 1
      %p282 = por %p280, %p281
      %p284 = scmp.ne.s32.totalorder %s269, %s283
      %p285 = scmp.eq.s32.totalorder %s32, 0
      %p286 = por %p284, %p285
      %s288 = sadd.s32 %s287, 1
      %p291 = scmp.eq.s32.totalorder %s26, 1
      %p292 = scmp.ne.s32.totalorder %s287, %s289
      %p293 = scmp.eq.s32.totalorder %s26, 0
      %p294 = por %p292, %p293
      %p295 = scmp.ne.s32.totalorder %s287, %s289
      %p296 = scmp.eq.s32.totalorder %s31, 1
      %p297 = por %p295, %p296
      %p298 = scmp.ne.s32.totalorder %s289, %s290
      %p299 = scmp.eq.s32.totalorder %s31, 0
      %p300 = por %p298, %p299
      %p301 = scmp.ne.s32.totalorder %s289, %s290
      %p302 = scmp.eq.s32.totalorder %s32, 1
      %p303 = por %p301, %p302
      %p305 = scmp.ne.s32.totalorder %s290, %s304
      %p306 = scmp.eq.s32.totalorder %s32, 0
      %p307 = por %p305, %p306
      %s309 = sadd.s32 %s308, 1
      %p312 = scmp.eq.s32.totalorder %s26, 1
      %p313 = scmp.ne.s32.totalorder %s308, %s310
      %p314 = scmp.eq.s32.totalorder %s26, 0
      %p315 = por %p313, %p314
      %p316 = scmp.ne.s32.totalorder %s308, %s310
      %p317 = scmp.eq.s32.totalorder %s31, 1
      %p318 = por %p316, %p317
      %p319 = scmp.ne.s32.totalorder %s310, %s311
      %p320 = scmp.eq.s32.totalorder %s31, 0
      %p321 = por %p319, %p320
      %p322 = scmp.ne.s32.totalorder %s310, %s311
      %p323 = scmp.eq.s32.totalorder %s32, 1
      %p324 = por %p322, %p323
      %p326 = scmp.ne.s32.totalorder %s311, %s325
      %p327 = scmp.eq.s32.totalorder %s32, 0
      %p328 = por %p326, %p327
      %s330 = sadd.s32 %s329, 1
      %p333 = scmp.eq.s32.totalorder %s26, 1
      %p334 = scmp.ne.s32.totalorder %s329, %s331
      %p335 = scmp.eq.s32.totalorder %s26, 0
      %p336 = por %p334, %p335
      %p337 = scmp.ne.s32.totalorder %s329, %s331
      %p338 = scmp.eq.s32.totalorder %s31, 1
      %p339 = por %p337, %p338
      %p340 = scmp.ne.s32.totalorder %s331, %s332
      %p341 = scmp.eq.s32.totalorder %s31, 0
      %p342 = por %p340, %p341
      %p343 = scmp.ne.s32.totalorder %s331, %s332
      %p344 = scmp.eq.s32.totalorder %s32, 1
      %p345 = por %p343, %p344
      %p347 = scmp.ne.s32.totalorder %s332, %s346
      %p348 = scmp.eq.s32.totalorder %s32, 0
      %p349 = por %p347, %p348
      %s350 = ssub.s32 %s33, %s45
      %s351 = ssub.s32 %s34, %s41
      %s352 = sor.u32 %s350, %s351
      %p353 = scmp.eq.s32.totalorder %s352, 0
      %s355 = sadd.s32 %s354, 1
      %s356 = scalar_select %p353, %s354, %s355
      %p359 = pneg %p353
      %p360 = scmp.eq.s32.totalorder %s26, 1
      %p361 = por %p359, %p360
      %p362 = scmp.ne.s32.totalorder %s354, %s357
      %p363 = scmp.eq.s32.totalorder %s26, 0
      %p364 = por %p362, %p363
      %p365 = scmp.ne.s32.totalorder %s354, %s357
      %p366 = scmp.eq.s32.totalorder %s31, 1
      %p367 = por %p365, %p366
      %p368 = scmp.ne.s32.totalorder %s357, %s358
      %p369 = scmp.eq.s32.totalorder %s31, 0
      %p370 = por %p368, %p369
      %p371 = scmp.ne.s32.totalorder %s357, %s358
      %p372 = scmp.eq.s32.totalorder %s32, 1
      %p373 = por %p371, %p372
      %p375 = scmp.ne.s32.totalorder %s358, %s374
      %p376 = scmp.eq.s32.totalorder %s32, 0
      %p377 = por %p375, %p376
      %p378 = scmp.le.s32.totalorder 1, %s26
      %p379 = scmp.lt.s32.totalorder %s26, 3
      %p380 = pnand %p378, %p379
      %p381 = pneg %p380
      // Predicated region
      $region9: #{tpu_custom_call.1} parent=5 // pred_check
        _
      $region10: #{tpu_custom_call.1} parent=5 // pred_check_branch
        %383 = sbr.rel (%p380) target = $region12
      $region11: #{tpu_custom_call.1} parent=5 // pred_region
        %s384 = ssub.s32 %s26, 1
        // Predicated region
        $region13: #{tpu_custom_call.1} parent=11 // pred_check
          %p385 = pneg %p111
        $region14: #{tpu_custom_call.1} parent=11 // pred_check_branch
          %387 = sbr.rel (%p385) target = $region16
        $region15: #{tpu_custom_call.1} parent=11 // pred_region
          _
        $region16: #{tpu_custom_call.1} parent=11 // pred_fallthru
          _
        // Predicated region
        $region17: #{tpu_custom_call.1} parent=11 // pred_check
          %p388 = pneg %p132
        $region18: #{tpu_custom_call.1} parent=11 // pred_check_branch
          %390 = sbr.rel (%p388) target = $region20
        $region19: #{tpu_custom_call.1} parent=11 // pred_region
          _
        $region20: #{tpu_custom_call.1} parent=11 // pred_fallthru
          _
        // Predicated region
        $region21: #{tpu_custom_call.1} parent=11 // pred_check
          %p391 = pneg %p153
        $region22: #{tpu_custom_call.1} parent=11 // pred_check_branch
          %393 = sbr.rel (%p391) target = $region24
        $region23: #{tpu_custom_call.1} parent=11 // pred_region
          _
        $region24: #{tpu_custom_call.1} parent=11 // pred_fallthru
          _
        // Predicated region
        $region25: #{tpu_custom_call.1} parent=11 // pred_check
          %p394 = pneg %p174
        $region26: #{tpu_custom_call.1} parent=11 // pred_check_branch
          %396 = sbr.rel (%p394) target = $region28
        $region27: #{tpu_custom_call.1} parent=11 // pred_region
          _
        $region28: #{tpu_custom_call.1} parent=11 // pred_fallthru
          _
        // Predicated region
        $region29: #{tpu_custom_call.1} parent=11 // pred_check
          %p397 = pneg %p195
        $region30: #{tpu_custom_call.1} parent=11 // pred_check_branch
          %399 = sbr.rel (%p397) target = $region32
        $region31: #{tpu_custom_call.1} parent=11 // pred_region
          _
        $region32: #{tpu_custom_call.1} parent=11 // pred_fallthru
          _
        // Predicated region
        $region33: #{tpu_custom_call.1} parent=11 // pred_check
          %p400 = pneg %p216
        $region34: #{tpu_custom_call.1} parent=11 // pred_check_branch
          %402 = sbr.rel (%p400) target = $region36
        $region35: #{tpu_custom_call.1} parent=11 // pred_region
          _
        $region36: #{tpu_custom_call.1} parent=11 // pred_fallthru
          _
        // Predicated region
        $region37: #{tpu_custom_call.1} parent=11 // pred_check
          %p403 = pneg %p237
        $region38: #{tpu_custom_call.1} parent=11 // pred_check_branch
          %405 = sbr.rel (%p403) target = $region40
        $region39: #{tpu_custom_call.1} parent=11 // pred_region
          _
        $region40: #{tpu_custom_call.1} parent=11 // pred_fallthru
          _
        // Predicated region
        $region41: #{tpu_custom_call.1} parent=11 // pred_check
          %p406 = pneg %p258
        $region42: #{tpu_custom_call.1} parent=11 // pred_check_branch
          %408 = sbr.rel (%p406) target = $region44
        $region43: #{tpu_custom_call.1} parent=11 // pred_region
          _
        $region44: #{tpu_custom_call.1} parent=11 // pred_fallthru
          _
        // Predicated region
        $region45: #{tpu_custom_call.1} parent=11 // pred_check
          %p409 = pneg %p279
        $region46: #{tpu_custom_call.1} parent=11 // pred_check_branch
          %411 = sbr.rel (%p409) target = $region48
        $region47: #{tpu_custom_call.1} parent=11 // pred_region
          _
        $region48: #{tpu_custom_call.1} parent=11 // pred_fallthru
          _
        // Predicated region
        $region49: #{tpu_custom_call.1} parent=11 // pred_check
          %p412 = pneg %p300
        $region50: #{tpu_custom_call.1} parent=11 // pred_check_branch
          %414 = sbr.rel (%p412) target = $region52
        $region51: #{tpu_custom_call.1} parent=11 // pred_region
          _
        $region52: #{tpu_custom_call.1} parent=11 // pred_fallthru
          _
        // Predicated region
        $region53: #{tpu_custom_call.1} parent=11 // pred_check
          %p415 = pneg %p321
        $region54: #{tpu_custom_call.1} parent=11 // pred_check_branch
          %417 = sbr.rel (%p415) target = $region56
        $region55: #{tpu_custom_call.1} parent=11 // pred_region
          _
        $region56: #{tpu_custom_call.1} parent=11 // pred_fallthru
          _
        // Predicated region
        $region57: #{tpu_custom_call.1} parent=11 // pred_check
          %p418 = pneg %p342
        $region58: #{tpu_custom_call.1} parent=11 // pred_check_branch
          %420 = sbr.rel (%p418) target = $region60
        $region59: #{tpu_custom_call.1} parent=11 // pred_region
          _
        $region60: #{tpu_custom_call.1} parent=11 // pred_fallthru
          _
      $region12: #{tpu_custom_call.1} parent=5 // pred_fallthru
        _
      %p421 = scmp.lt.s32.totalorder %s26, 2
      // Predicated region
      $region61: #{tpu_custom_call.1} parent=5 // pred_check
        %p422 = pneg %p421
      $region62: #{tpu_custom_call.1} parent=5 // pred_check_branch
        %424 = sbr.rel (%p422) target = $region64
      $region63: #{tpu_custom_call.1} parent=5 // pred_region
        // Predicated region
        $region65: #{tpu_custom_call.1} parent=63 // pred_check
          %p425 = pneg %p58
        $region66: #{tpu_custom_call.1} parent=63 // pred_check_branch
          %427 = sbr.rel (%p425) target = $region68
        $region67: #{tpu_custom_call.1} parent=63 // pred_region
          %s428 = sand.u32 %s48, 1
          %s429 = scalar_lea.sflag [#allocation7], %s428
          %s430 = sand.u32 %s48, 1
          %s431 = smul.addr %s430, 4
          %s432 = scalar_lea.vmem [#allocation6], %s431
          %s434 = ssub.s32 64, 64
          %435 = vsyncadd %s429, %s434
          %s436 = smul.addr %s33, 64
          %s437 = scalar_lea.hbm %s0, %s436
          %s439 = sshll.u32 %s432, 4
          %s440 = int_to_ptr.vmem [resolvable:$true] %s439
          %442 = dma.hbm_to_vmem [thread:$0]  %s437, 64, %s440, %s429
        $region68: #{tpu_custom_call.1} parent=63 // pred_fallthru
          _
        // Predicated region
        $region69: #{tpu_custom_call.1} parent=63 // pred_check
          %p443 = pneg %p84
        $region70: #{tpu_custom_call.1} parent=63 // pred_check_branch
          %445 = sbr.rel (%p443) target = $region72
        $region71: #{tpu_custom_call.1} parent=63 // pred_region
          %p446 = scmp.lt.s32.totalorder %s33, 1
          %s447 = scalar_select %p446, %s33, 1
          %s448 = scalar_lea.vmem %s1, %s447
        $region72: #{tpu_custom_call.1} parent=63 // pred_fallthru
          _
      $region64: #{tpu_custom_call.1} parent=5 // pred_fallthru
        _
      %p449 = scmp.le.s32.totalorder 1, %s26
      %p450 = scmp.lt.s32.totalorder %s26, 3
      %p451 = pnand %p449, %p450
      %p452 = pneg %p451
      // Predicated region
      $region73: #{tpu_custom_call.1} parent=5 // pred_check
        _
      $region74: #{tpu_custom_call.1} parent=5 // pred_check_branch
        %454 = sbr.rel (%p451) target = $region76
      $region75: #{tpu_custom_call.1} parent=5 // pred_region
        %s455 = ssub.s32 %s26, 1
        %s456 = sand.u32 %s51, 1
        %s457 = scalar_lea.sflag [#allocation7], %s456
        %s458 = sand.u32 %s51, 1
        %s459 = smul.addr %s458, 4
        %s460 = scalar_lea.vmem [#allocation6], %s459
        // Predicated region
        $region77: #{tpu_custom_call.1} parent=75 // pred_check
          %p461 = pneg %p64
        $region78: #{tpu_custom_call.1} parent=75 // pred_check_branch
          %463 = sbr.rel (%p461) target = $region80
        $region79: #{tpu_custom_call.1} parent=75 // pred_region
          %464 = dma.done %s457, 64
        $region80: #{tpu_custom_call.1} parent=75 // pred_fallthru
          _
        %s465 = sand.u32 %s51, 1
        %s466 = scalar_lea.sflag [#allocation7], %s465
        %s467 = sand.u32 %s51, 1
        %s468 = smul.addr %s467, 4
        %s469 = scalar_lea.vmem [#allocation6], %s468
        %p470 = pneg %p64
        %p471 = pneg %p61
        %p472 = scmp.lt.s32.totalorder %s35, 1
        %s473 = scalar_select %p472, %s35, 1
        %s474 = scalar_lea.vmem %s1, %s473
        %p475 = pneg %p90
        %p476 = pneg %p87
        %p477 = pneg %p111
        %p478 = pneg %p108
        %p479 = pneg %p132
        %p480 = pneg %p129
        %p481 = pneg %p153
        %p482 = pneg %p150
        %p483 = pneg %p174
        %p484 = pneg %p171
        %p485 = pneg %p195
        %p486 = pneg %p192
        %p487 = pneg %p216
        %p488 = pneg %p213
        %p489 = pneg %p237
        %p490 = pneg %p234
        %p491 = pneg %p258
        %p492 = pneg %p255
        %p493 = pneg %p279
        %p494 = pneg %p276
        %p495 = pneg %p300
        %p496 = pneg %p297
        %p497 = pneg %p321
        %p498 = pneg %p318
        %p499 = pneg %p342
        %p500 = pneg %p339
        %p501 = pneg %p370
        %p502 = pneg %p367
        %s503 = sand.u32 %s357, 1
        %s504 = scalar_lea.sflag [#allocation8], %s503
        %s505 = sand.u32 %s357, 1
        %s506 = smul.addr %s505, 4
        %s507 = scalar_lea.vmem [#allocation9], %s506
        %p508 = scmp.lt.s32.totalorder %s35, 1
        %s509 = scalar_select %p508, %s35, 1
        %s510 = scalar_lea.vmem %s1, %s509
        %p512 = scmp.eq.s32.totalorder %s36, 0
        // Predicated region
        $region81: #{tpu_custom_call.1} parent=75 // pred_check
          %p513 = pneg %p512
        $region82: #{tpu_custom_call.1} parent=75 // pred_check_branch
          %515 = sbr.rel (%p513) target = $region84
        $region83: #{tpu_custom_call.1} parent=75 // pred_region
          %v516 = vld [vmem:[%s460] sm:$0xf]
          %v517 = vld [vmem:[%s2] sm:$0xf]
          %v518 = vld [vmem:[%s2 + $0x4] sm:$0xf]
          %v519 = vld [vmem:[%s2 + $0x8] sm:$0xf]
          %v520 = vld [vmem:[%s2 + $0xc] sm:$0xf]
          %v521 = vld [vmem:[%s3] sm:$0x1]
          %v523 = vlaneseq
          %v524 = vshrl.u32 %v523, 7
          %v525 = vsub.s32 0, %v524
          %v526 = vrot.slane %v521, %v525
          %v532 = vunpack.c.l.b16 %v517
          %v533 = vunpack.c.l.b16 %v518
          %v534 = vunpack.c.l.b16 %v519
          %v535 = vunpack.c.l.b16 %v520
          %v536 = vpack.c.b16 %v533, %v532
          %v537 = vpack.c.b16 %v535, %v534
          %vm540 = vcmask 261120
          %v542 = vsel %vm540, %v516, 0
          %544 = vmatprep.subr.bf16.mxu0 0
          %545 = vmatpush1.bf16.msra.mxu0 %v536
          %546 = vmatprep.subr.bf16.mxu0 0
          %547 = vmatpush1.bf16.msra.mxu0 %v537
          %548 = vmatprep.subr.bf16.mxu0 0
          %549 = vmatpush1.bf16.msra.mxu0 0
          %550 = vmatprep.subr.bf16.mxu0 0
          %551 = vmatpush1.bf16.msra.mxu0 0
          %552 = vmatprep.subr.bf16.mxu0 0
          %553 = vmatpush1.bf16.msra.mxu0 0
          %554 = vmatprep.subr.bf16.mxu0 0
          %555 = vmatpush1.bf16.msra.mxu0 0
          %556 = vmatprep.subr.bf16.mxu0 0
          %557 = vmatpush1.bf16.msra.mxu0 0
          %558 = vmatprep.subr.bf16.mxu0 0
          %559 = vmatpush1.bf16.msra.mxu0 0
          %560 = vmatprep.subr.bf16.mxu0 0
          %561 = vmatpush1.bf16.msra.mxu0 0
          %562 = vmatprep.subr.bf16.mxu0 0
          %563 = vmatpush1.bf16.msra.mxu0 0
          %564 = vmatprep.subr.bf16.mxu0 0
          %565 = vmatpush1.bf16.msra.mxu0 0
          %566 = vmatprep.subr.bf16.mxu0 0
          %567 = vmatpush1.bf16.msra.mxu0 0
          %568 = vmatprep.subr.bf16.mxu0 0
          %569 = vmatpush1.bf16.msra.mxu0 0
          %570 = vmatprep.subr.bf16.mxu0 0
          %571 = vmatpush1.bf16.msra.mxu0 0
          %572 = vmatprep.subr.bf16.mxu0 0
          %573 = vmatpush1.bf16.msra.mxu0 0
          %574 = vmatprep.subr.bf16.mxu0 0
          %575 = vmatpush1.bf16.msra.mxu0 0
          %576 = vmatprep.mubr.bf16.mxu0 0
          %577 = vmatmul.mubr.bf16.gmra.mrb[0].mxu0 %v542
          %v578 = vpop.f32.mrb[0].mxu0
          %v579 = vadd.f32 %v526, %v578
          %v580 = vpop.f32.mrb[0].mxu0
          %v581 = vpop.f32.mrb[0].mxu0
          %v582 = vpop.f32.mrb[0].mxu0
          %583 = vdwg.mxu0
          %v584 = vpack.c.bf16 %v579, %v579
          %vm585 = vcmask 257024
          %586 = vst.msk [vmem:[#allocation2] sm:$0xf] %vm585, %v584
          %v588 = vunpack.c.l.b16 %v584
          %v589 = vpack.c.b16 %v588, %v588
          %590 = vrot.lane.b32.xlu0 %v589, 96
          %v591 = vpop.permute.xlu0 %590
          %593 = vst.msk [vmem:[#allocation3] sm:$0xf] %vm585, %v591
          %594 = vrot.lane.b32.xlu0 %v589, 64
          %v595 = vpop.permute.xlu0 %594
          %597 = vst.msk [vmem:[#allocation4] sm:$0xf] %vm585, %v595
        $region84: #{tpu_custom_call.1} parent=75 // pred_fallthru
          _
        %s598 = smul.u32 %s36, 8
        %s599 = sshra.s32 %s598, 3
        %s600 = sand.u32 %s598, 7
        %s601 = smul.addr %s599, 4
        %s602 = scalar_lea.vmem %s460, %s601 [#allocation6]
        %v603 = vld [vmem:[%s602] sm:$0xf]
        %s604 = smul.addr %s599, 4
        %s605 = scalar_lea.vmem [#allocation2], %s604
        %v606 = vld [vmem:[%s605] sm:$0xf]
        %v607 = vld [vmem:[%s510] sm:$0x1]
        %v608 = vsub.f32 1.0, %v607
        %v609 = vmul.f32 %v608, -1e+09
        %v611 = vlaneseq
        %v612 = vshrl.u32 %v611, 7
        %v613 = vsub.s32 0, %v612
        %v614 = vrot.slane %v609, %v613
        %v616 = vld [vmem:[#allocation3] sm:$0xf]
        %vm617 = vcmask 64512
        %v619 = vsel %vm617, %v606, 0
        %v622 = vsel %vm617, %v616, 0
        %624 = vmatprep.subr.bf16.mxu0 0
        %625 = vmatpush1.bf16.xpose.msra.mxu0 %v622
        %626 = vmatprep.subr.bf16.mxu0 0
        %627 = vmatpush1.bf16.xpose.msra.mxu0 0
        %628 = vmatprep.subr.bf16.mxu0 0
        %629 = vmatpush1.bf16.xpose.msra.mxu0 0
        %630 = vmatprep.subr.bf16.mxu0 0
        %631 = vmatpush1.bf16.xpose.msra.mxu0 0
        %632 = vmatprep.subr.bf16.mxu0 0
        %633 = vmatpush1.bf16.xpose.msra.mxu0 0
        %634 = vmatprep.subr.bf16.mxu0 0
        %635 = vmatpush1.bf16.xpose.msra.mxu0 0
        %636 = vmatprep.subr.bf16.mxu0 0
        %637 = vmatpush1.bf16.xpose.msra.mxu0 0
        %638 = vmatprep.subr.bf16.mxu0 0
        %639 = vmatpush1.bf16.xpose.msra.mxu0 0
        %640 = vmatprep.subr.bf16.mxu0 0
        %641 = vmatpush1.bf16.xpose.msra.mxu0 0
        %642 = vmatprep.subr.bf16.mxu0 0
        %643 = vmatpush1.bf16.xpose.msra.mxu0 0
        %644 = vmatprep.subr.bf16.mxu0 0
        %645 = vmatpush1.bf16.xpose.msra.mxu0 0
        %646 = vmatprep.subr.bf16.mxu0 0
        %647 = vmatpush1.bf16.xpose.msra.mxu0 0
        %648 = vmatprep.subr.bf16.mxu0 0
        %649 = vmatpush1.bf16.xpose.msra.mxu0 0
        %650 = vmatprep.subr.bf16.mxu0 0
        %651 = vmatpush1.bf16.xpose.msra.mxu0 0
        %652 = vmatprep.subr.bf16.mxu0 0
        %653 = vmatpush1.bf16.xpose.msra.mxu0 0
        %654 = vmatprep.subr.bf16.mxu0 0
        %655 = vmatpush1.bf16.xpose.msra.mxu0 0
        %656 = vmatprep.mubr.bf16.mxu0 0
        %657 = vmatmul.mubr.bf16.gmra.mrb[0].mxu0 %v619
        %v658 = vpop.f32.mrb[0].mxu0
        %v659 = vadd.f32 %v614, %v658
        %v660 = vpop.f32.mrb[0].mxu0
        %v661 = vpop.f32.mrb[0].mxu0
        %v662 = vpop.f32.mrb[0].mxu0
        %663 = vdwg.mxu0
        %v664 = vsel %vm617, %v659, -inf
        %665 = vmax.xlane.f32.xlu0 %v664
        %v666 = vpop.xlane.xlu0 %665
        %v667 = vsub.f32 %v659, %v666
        %v668 = vmul.f32 %v667, 1.442695
        %v669 = vpow.pop %v668
        %v670 = vsel %vm617, %v669, 0.0
        %671 = vadd.xlane.f32.xlu0 %v670
        %v672 = vpop.xlane.xlu0 %671
        %v673 = vrcp.pop %v672
        %v674 = vmul.f32 %v669, %v673
        %v675 = vpack.c.bf16 %v674, %v674
        %v676 = vld [vmem:[#allocation4] sm:$0xf]
        %v678 = vsel %vm617, %v675, 0
        %vm680 = vcmask 1043456
        %v682 = vsel %vm680, %v676, 0
        %684 = vmatprep.subr.bf16.mxu0 0
        %685 = vmatpush1.bf16.msra.mxu0 %v682
        %686 = vmatprep.subr.bf16.mxu0 0
        %687 = vmatpush1.bf16.msra.mxu0 0
        %688 = vmatprep.subr.bf16.mxu0 0
        %689 = vmatpush1.bf16.msra.mxu0 0
        %690 = vmatprep.subr.bf16.mxu0 0
        %691 = vmatpush1.bf16.msra.mxu0 0
        %692 = vmatprep.subr.bf16.mxu0 0
        %693 = vmatpush1.bf16.msra.mxu0 0
        %694 = vmatprep.subr.bf16.mxu0 0
        %695 = vmatpush1.bf16.msra.mxu0 0
        %696 = vmatprep.subr.bf16.mxu0 0
        %697 = vmatpush1.bf16.msra.mxu0 0
        %698 = vmatprep.subr.bf16.mxu0 0
        %699 = vmatpush1.bf16.msra.mxu0 0
        %700 = vmatprep.subr.bf16.mxu0 0
        %701 = vmatpush1.bf16.msra.mxu0 0
        %702 = vmatprep.subr.bf16.mxu0 0
        %703 = vmatpush1.bf16.msra.mxu0 0
        %704 = vmatprep.subr.bf16.mxu0 0
        %705 = vmatpush1.bf16.msra.mxu0 0
        %706 = vmatprep.subr.bf16.mxu0 0
        %707 = vmatpush1.bf16.msra.mxu0 0
        %708 = vmatprep.subr.bf16.mxu0 0
        %709 = vmatpush1.bf16.msra.mxu0 0
        %710 = vmatprep.subr.bf16.mxu0 0
        %711 = vmatpush1.bf16.msra.mxu0 0
        %712 = vmatprep.subr.bf16.mxu0 0
        %713 = vmatpush1.bf16.msra.mxu0 0
        %714 = vmatprep.subr.bf16.mxu0 0
        %715 = vmatpush1.bf16.msra.mxu0 0
        %716 = vmatprep.mubr.bf16.mxu0 0
        %717 = vmatmul.mubr.bf16.gmra.mrb[0].mxu0 %v678
        %v718 = vpop.f32.mrb[0].mxu0
        %v719 = vadd.f32 0.0, %v718
        %v720 = vpop.f32.mrb[0].mxu0
        %v721 = vpop.f32.mrb[0].mxu0
        %v722 = vpop.f32.mrb[0].mxu0
        %723 = vdwg.mxu0
        %v724 = vpack.c.bf16 %v719, %v719
        %vm725 = vcmask 60416
        %726 = vst.msk [vmem:[#allocation5] sm:$0xf] %vm725, %v724
        %v727 = vld [vmem:[#allocation3] sm:$0xf]
        %v729 = vunpack.c.l.b16 %v606
        %v730 = vpack.c.b16 %v729, %v729
        %731 = vrot.lane.b32.xlu0 %v730, 120
        %v732 = vpop.permute.xlu0 %731
        %v734 = vunpack.c.l.b16 %v727
        %v735 = vpack.c.b16 %v734, %v734
        %736 = vrot.lane.b32.xlu0 %v735, 120
        %v737 = vpop.permute.xlu0 %736
        %v739 = vsel %vm617, %v732, 0
        %v742 = vsel %vm617, %v737, 0
        %744 = vmatprep.subr.bf16.mxu0 0
        %745 = vmatpush1.bf16.xpose.msra.mxu0 %v742
        %746 = vmatprep.subr.bf16.mxu0 0
        %747 = vmatpush1.bf16.xpose.msra.mxu0 0
        %748 = vmatprep.subr.bf16.mxu0 0
        %749 = vmatpush1.bf16.xpose.msra.mxu0 0
        %750 = vmatprep.subr.bf16.mxu0 0
        %751 = vmatpush1.bf16.xpose.msra.mxu0 0
        %752 = vmatprep.subr.bf16.mxu0 0
        %753 = vmatpush1.bf16.xpose.msra.mxu0 0
        %754 = vmatprep.subr.bf16.mxu0 0
        %755 = vmatpush1.bf16.xpose.msra.mxu0 0
        %756 = vmatprep.subr.bf16.mxu0 0
        %757 = vmatpush1.bf16.xpose.msra.mxu0 0
        %758 = vmatprep.subr.bf16.mxu0 0
        %759 = vmatpush1.bf16.xpose.msra.mxu0 0
        %760 = vmatprep.subr.bf16.mxu0 0
        %761 = vmatpush1.bf16.xpose.msra.mxu0 0
        %762 = vmatprep.subr.bf16.mxu0 0
        %763 = vmatpush1.bf16.xpose.msra.mxu0 0
        %764 = vmatprep.subr.bf16.mxu0 0
        %765 = vmatpush1.bf16.xpose.msra.mxu0 0
        %766 = vmatprep.subr.bf16.mxu0 0
        %767 = vmatpush1.bf16.xpose.msra.mxu0 0
        %768 = vmatprep.subr.bf16.mxu0 0
        %769 = vmatpush1.bf16.xpose.msra.mxu0 0
        %770 = vmatprep.subr.bf16.mxu0 0
        %771 = vmatpush1.bf16.xpose.msra.mxu0 0
        %772 = vmatprep.subr.bf16.mxu0 0
        %773 = vmatpush1.bf16.xpose.msra.mxu0 0
        %774 = vmatprep.subr.bf16.mxu0 0
        %775 = vmatpush1.bf16.xpose.msra.mxu0 0
        %776 = vmatprep.mubr.bf16.mxu0 0
        %777 = vmatmul.mubr.bf16.gmra.mrb[0].mxu0 %v739
        %v778 = vpop.f32.mrb[0].mxu0
        %v779 = vadd.f32 %v614, %v778
        %v780 = vpop.f32.mrb[0].mxu0
        %v781 = vpop.f32.mrb[0].mxu0
        %v782 = vpop.f32.mrb[0].mxu0
        %783 = vdwg.mxu0
        %v784 = vsel %vm617, %v779, -inf
        %785 = vmax.xlane.f32.xlu0 %v784
        %v786 = vpop.xlane.xlu0 %785
        %v787 = vsub.f32 %v779, %v786
        %v788 = vmul.f32 %v787, 1.442695
        %v789 = vpow.pop %v788
        %v790 = vsel %vm617, %v789, 0.0
        %791 = vadd.xlane.f32.xlu0 %v790
        %v792 = vpop.xlane.xlu0 %791
        %v793 = vrcp.pop %v792
        %v794 = vmul.f32 %v789, %v793
        %v795 = vpack.c.bf16 %v794, %v794
        %v796 = vld [vmem:[#allocation4] sm:$0xf]
        %v798 = vunpack.c.l.b16 %v796
        %v799 = vpack.c.b16 %v798, %v798
        %800 = vrot.lane.b32.xlu0 %v799, 120
        %v801 = vpop.permute.xlu0 %800
        %v803 = vsel %vm617, %v795, 0
        %v806 = vsel %vm680, %v801, 0
        %808 = vmatprep.subr.bf16.mxu0 0
        %809 = vmatpush1.bf16.msra.mxu0 %v806
        %810 = vmatprep.subr.bf16.mxu0 0
        %811 = vmatpush1.bf16.msra.mxu0 0
        %812 = vmatprep.subr.bf16.mxu0 0
        %813 = vmatpush1.bf16.msra.mxu0 0
        %814 = vmatprep.subr.bf16.mxu0 0
        %815 = vmatpush1.bf16.msra.mxu0 0
        %816 = vmatprep.subr.bf16.mxu0 0
        %817 = vmatpush1.bf16.msra.mxu0 0
        %818 = vmatprep.subr.bf16.mxu0 0
        %819 = vmatpush1.bf16.msra.mxu0 0
        %820 = vmatprep.subr.bf16.mxu0 0
        %821 = vmatpush1.bf16.msra.mxu0 0
        %822 = vmatprep.subr.bf16.mxu0 0
        %823 = vmatpush1.bf16.msra.mxu0 0
        %824 = vmatprep.subr.bf16.mxu0 0
        %825 = vmatpush1.bf16.msra.mxu0 0
        %826 = vmatprep.subr.bf16.mxu0 0
        %827 = vmatpush1.bf16.msra.mxu0 0
        %828 = vmatprep.subr.bf16.mxu0 0
        %829 = vmatpush1.bf16.msra.mxu0 0
        %830 = vmatprep.subr.bf16.mxu0 0
        %831 = vmatpush1.bf16.msra.mxu0 0
        %832 = vmatprep.subr.bf16.mxu0 0
        %833 = vmatpush1.bf16.msra.mxu0 0
        %834 = vmatprep.subr.bf16.mxu0 0
        %835 = vmatpush1.bf16.msra.mxu0 0
        %836 = vmatprep.subr.bf16.mxu0 0
        %837 = vmatpush1.bf16.msra.mxu0 0
        %838 = vmatprep.subr.bf16.mxu0 0
        %839 = vmatpush1.bf16.msra.mxu0 0
        %840 = vmatprep.mubr.bf16.mxu0 0
        %841 = vmatmul.mubr.bf16.gmra.mrb[0].mxu0 %v803
        %v842 = vpop.f32.mrb[0].mxu0
        %v843 = vadd.f32 0.0, %v842
        %v844 = vpop.f32.mrb[0].mxu0
        %v845 = vpop.f32.mrb[0].mxu0
        %v846 = vpop.f32.mrb[0].mxu0
        %847 = vdwg.mxu0
        %v848 = vpack.c.bf16 %v843, %v843
        %v850 = vunpack.c.l.b16 %v848
        %v851 = vpack.c.b16 %v850, %v850
        %852 = vrot.lane.b32.xlu0 %v851, 8
        %v853 = vpop.permute.xlu0 %852
        %vm855 = vcmask 126016
        %856 = vst.msk [vmem:[#allocation5] sm:$0xf] %vm855, %v853
        %v857 = vld [vmem:[#allocation3] sm:$0xf]
        %858 = vrot.lane.b32.xlu0 %v730, 112
        %v859 = vpop.permute.xlu0 %858
        %v861 = vunpack.c.l.b16 %v857
        %v862 = vpack.c.b16 %v861, %v861
        %863 = vrot.lane.b32.xlu0 %v862, 112
        %v864 = vpop.permute.xlu0 %863
        %v866 = vsel %vm617, %v859, 0
        %v869 = vsel %vm617, %v864, 0
        %871 = vmatprep.subr.bf16.mxu0 0
        %872 = vmatpush1.bf16.xpose.msra.mxu0 %v869
        %873 = vmatprep.subr.bf16.mxu0 0
        %874 = vmatpush1.bf16.xpose.msra.mxu0 0
        %875 = vmatprep.subr.bf16.mxu0 0
        %876 = vmatpush1.bf16.xpose.msra.mxu0 0
        %877 = vmatprep.subr.bf16.mxu0 0
        %878 = vmatpush1.bf16.xpose.msra.mxu0 0
        %879 = vmatprep.subr.bf16.mxu0 0
        %880 = vmatpush1.bf16.xpose.msra.mxu0 0
        %881 = vmatprep.subr.bf16.mxu0 0
        %882 = vmatpush1.bf16.xpose.msra.mxu0 0
        %883 = vmatprep.subr.bf16.mxu0 0
        %884 = vmatpush1.bf16.xpose.msra.mxu0 0
        %885 = vmatprep.subr.bf16.mxu0 0
        %886 = vmatpush1.bf16.xpose.msra.mxu0 0
        %887 = vmatprep.subr.bf16.mxu0 0
        %888 = vmatpush1.bf16.xpose.msra.mxu0 0
        %889 = vmatprep.subr.bf16.mxu0 0
        %890 = vmatpush1.bf16.xpose.msra.mxu0 0
        %891 = vmatprep.subr.bf16.mxu0 0
        %892 = vmatpush1.bf16.xpose.msra.mxu0 0
        %893 = vmatprep.subr.bf16.mxu0 0
        %894 = vmatpush1.bf16.xpose.msra.mxu0 0
        %895 = vmatprep.subr.bf16.mxu0 0
        %896 = vmatpush1.bf16.xpose.msra.mxu0 0
        %897 = vmatprep.subr.bf16.mxu0 0
        %898 = vmatpush1.bf16.xpose.msra.mxu0 0
        %899 = vmatprep.subr.bf16.mxu0 0
        %900 = vmatpush1.bf16.xpose.msra.mxu0 0
        %901 = vmatprep.subr.bf16.mxu0 0
        %902 = vmatpush1.bf16.xpose.msra.mxu0 0
        %903 = vmatprep.mubr.bf16.mxu0 0
        %904 = vmatmul.mubr.bf16.gmra.mrb[0].mxu0 %v866
        %v905 = vpop.f32.mrb[0].mxu0
        %v906 = vadd.f32 %v614, %v905
        %v907 = vpop.f32.mrb[0].mxu0
        %v908 = vpop.f32.mrb[0].mxu0
        %v909 = vpop.f32.mrb[0].mxu0
        %910 = vdwg.mxu0
        %v911 = vsel %vm617, %v906, -inf
        %912 = vmax.xlane.f32.xlu0 %v911
        %v913 = vpop.xlane.xlu0 %912
        %v914 = vsub.f32 %v906, %v913
        %v915 = vmul.f32 %v914, 1.442695
        %v916 = vpow.pop %v915
        %v917 = vsel %vm617, %v916, 0.0
        %918 = vadd.xlane.f32.xlu0 %v917
        %v919 = vpop.xlane.xlu0 %918
        %v920 = vrcp.pop %v919
        %v921 = vmul.f32 %v916, %v920
        %v922 = vpack.c.bf16 %v921, %v921
        %v923 = vld [vmem:[#allocation4] sm:$0xf]
        %v925 = vunpack.c.l.b16 %v923
        %v926 = vpack.c.b16 %v925, %v925
        %927 = vrot.lane.b32.xlu0 %v926, 112
        %v928 = vpop.permute.xlu0 %927
        %v930 = vsel %vm617, %v922, 0
        %v933 = vsel %vm680, %v928, 0
        %935 = vmatprep.subr.bf16.mxu0 0
        %936 = vmatpush1.bf16.msra.mxu0 %v933
        %937 = vmatprep.subr.bf16.mxu0 0
        %938 = vmatpush1.bf16.msra.mxu0 0
        %939 = vmatprep.subr.bf16.mxu0 0
        %940 = vmatpush1.bf16.msra.mxu0 0
        %941 = vmatprep.subr.bf16.mxu0 0
        %942 = vmatpush1.bf16.msra.mxu0 0
        %943 = vmatprep.subr.bf16.mxu0 0
        %944 = vmatpush1.bf16.msra.mxu0 0
        %945 = vmatprep.subr.bf16.mxu0 0
        %946 = vmatpush1.bf16.msra.mxu0 0
        %947 = vmatprep.subr.bf16.mxu0 0
        %948 = vmatpush1.bf16.msra.mxu0 0
        %949 = vmatprep.subr.bf16.mxu0 0
        %950 = vmatpush1.bf16.msra.mxu0 0
        %951 = vmatprep.subr.bf16.mxu0 0
        %952 = vmatpush1.bf16.msra.mxu0 0
        %953 = vmatprep.subr.bf16.mxu0 0
        %954 = vmatpush1.bf16.msra.mxu0 0
        %955 = vmatprep.subr.bf16.mxu0 0
        %956 = vmatpush1.bf16.msra.mxu0 0
        %957 = vmatprep.subr.bf16.mxu0 0
        %958 = vmatpush1.bf16.msra.mxu0 0
        %959 = vmatprep.subr.bf16.mxu0 0
        %960 = vmatpush1.bf16.msra.mxu0 0
        %961 = vmatprep.subr.bf16.mxu0 0
        %962 = vmatpush1.bf16.msra.mxu0 0
        %963 = vmatprep.subr.bf16.mxu0 0
        %964 = vmatpush1.bf16.msra.mxu0 0
        %965 = vmatprep.subr.bf16.mxu0 0
        %966 = vmatpush1.bf16.msra.mxu0 0
        %967 = vmatprep.mubr.bf16.mxu0 0
        %968 = vmatmul.mubr.bf16.gmra.mrb[0].mxu0 %v930
        %v969 = vpop.f32.mrb[0].mxu0
        %v970 = vadd.f32 0.0, %v969
        %v971 = vpop.f32.mrb[0].mxu0
        %v972 = vpop.f32.mrb[0].mxu0
        %v973 = vpop.f32.mrb[0].mxu0
        %974 = vdwg.mxu0
        %v975 = vpack.c.bf16 %v970, %v970
        %v977 = vunpack.c.l.b16 %v975
        %v978 = vpack.c.b16 %v977, %v977
        %979 = vrot.lane.b32.xlu0 %v978, 16
        %v980 = vpop.permute.xlu0 %979
        %vm982 = vcmask 191616
        %983 = vst.msk [vmem:[#allocation5] sm:$0xf] %vm982, %v980
        %v984 = vld [vmem:[#allocation3] sm:$0xf]
        %985 = vrot.lane.b32.xlu0 %v730, 104
        %v986 = vpop.permute.xlu0 %985
        %v988 = vunpack.c.l.b16 %v984
        %v989 = vpack.c.b16 %v988, %v988
        %990 = vrot.lane.b32.xlu0 %v989, 104
        %v991 = vpop.permute.xlu0 %990
        %v993 = vsel %vm617, %v986, 0
        %v996 = vsel %vm617, %v991, 0
        %998 = vmatprep.subr.bf16.mxu0 0
        %999 = vmatpush1.bf16.xpose.msra.mxu0 %v996
        %1000 = vmatprep.subr.bf16.mxu0 0
        %1001 = vmatpush1.bf16.xpose.msra.mxu0 0
        %1002 = vmatprep.subr.bf16.mxu0 0
        %1003 = vmatpush1.bf16.xpose.msra.mxu0 0
        %1004 = vmatprep.subr.bf16.mxu0 0
        %1005 = vmatpush1.bf16.xpose.msra.mxu0 0
        %1006 = vmatprep.subr.bf16.mxu0 0
        %1007 = vmatpush1.bf16.xpose.msra.mxu0 0
        %1008 = vmatprep.subr.bf16.mxu0 0
        %1009 = vmatpush1.bf16.xpose.msra.mxu0 0
        %1010 = vmatprep.subr.bf16.mxu0 0
        %1011 = vmatpush1.bf16.xpose.msra.mxu0 0
        %1012 = vmatprep.subr.bf16.mxu0 0
        %1013 = vmatpush1.bf16.xpose.msra.mxu0 0
        %1014 = vmatprep.subr.bf16.mxu0 0
        %1015 = vmatpush1.bf16.xpose.msra.mxu0 0
        %1016 = vmatprep.subr.bf16.mxu0 0
        %1017 = vmatpush1.bf16.xpose.msra.mxu0 0
        %1018 = vmatprep.subr.bf16.mxu0 0
        %1019 = vmatpush1.bf16.xpose.msra.mxu0 0
        %1020 = vmatprep.subr.bf16.mxu0 0
        %1021 = vmatpush1.bf16.xpose.msra.mxu0 0
        %1022 = vmatprep.subr.bf16.mxu0 0
        %1023 = vmatpush1.bf16.xpose.msra.mxu0 0
        %1024 = vmatprep.subr.bf16.mxu0 0
        %1025 = vmatpush1.bf16.xpose.msra.mxu0 0
        %1026 = vmatprep.subr.bf16.mxu0 0
        %1027 = vmatpush1.bf16.xpose.msra.mxu0 0
        %1028 = vmatprep.subr.bf16.mxu0 0
        %1029 = vmatpush1.bf16.xpose.msra.mxu0 0
        %1030 = vmatprep.mubr.bf16.mxu0 0
        %1031 = vmatmul.mubr.bf16.gmra.mrb[0].mxu0 %v993
        %v1032 = vpop.f32.mrb[0].mxu0
        %v1033 = vadd.f32 %v614, %v1032
        %v1034 = vpop.f32.mrb[0].mxu0
        %v1035 = vpop.f32.mrb[0].mxu0
        %v1036 = vpop.f32.mrb[0].mxu0
        %1037 = vdwg.mxu0
        %v1038 = vsel %vm617, %v1033, -inf
        %1039 = vmax.xlane.f32.xlu0 %v1038
        %v1040 = vpop.xlane.xlu0 %1039
        %v1041 = vsub.f32 %v1033, %v1040
        %v1042 = vmul.f32 %v1041, 1.442695
        %v1043 = vpow.pop %v1042
        %v1044 = vsel %vm617, %v1043, 0.0
        %1045 = vadd.xlane.f32.xlu0 %v1044
        %v1046 = vpop.xlane.xlu0 %1045
        %v1047 = vrcp.pop %v1046
        %v1048 = vmul.f32 %v1043, %v1047
        %v1049 = vpack.c.bf16 %v1048, %v1048
        %v1050 = vld [vmem:[#allocation4] sm:$0xf]
        %v1052 = vunpack.c.l.b16 %v1050
        %v1053 = vpack.c.b16 %v1052, %v1052
        %1054 = vrot.lane.b32.xlu0 %v1053, 104
        %v1055 = vpop.permute.xlu0 %1054
        %v1057 = vsel %vm617, %v1049, 0
        %v1060 = vsel %vm680, %v1055, 0
        %1062 = vmatprep.subr.bf16.mxu0 0
        %1063 = vmatpush1.bf16.msra.mxu0 %v1060
        %1064 = vmatprep.subr.bf16.mxu0 0
        %1065 = vmatpush1.bf16.msra.mxu0 0
        %1066 = vmatprep.subr.bf16.mxu0 0
        %1067 = vmatpush1.bf16.msra.mxu0 0
        %1068 = vmatprep.subr.bf16.mxu0 0
        %1069 = vmatpush1.bf16.msra.mxu0 0
        %1070 = vmatprep.subr.bf16.mxu0 0
        %1071 = vmatpush1.bf16.msra.mxu0 0
        %1072 = vmatprep.subr.bf16.mxu0 0
        %1073 = vmatpush1.bf16.msra.mxu0 0
        %1074 = vmatprep.subr.bf16.mxu0 0
        %1075 = vmatpush1.bf16.msra.mxu0 0
        %1076 = vmatprep.subr.bf16.mxu0 0
        %1077 = vmatpush1.bf16.msra.mxu0 0
        %1078 = vmatprep.subr.bf16.mxu0 0
        %1079 = vmatpush1.bf16.msra.mxu0 0
        %1080 = vmatprep.subr.bf16.mxu0 0
        %1081 = vmatpush1.bf16.msra.mxu0 0
        %1082 = vmatprep.subr.bf16.mxu0 0
        %1083 = vmatpush1.bf16.msra.mxu0 0
        %1084 = vmatprep.subr.bf16.mxu0 0
        %1085 = vmatpush1.bf16.msra.mxu0 0
        %1086 = vmatprep.subr.bf16.mxu0 0
        %1087 = vmatpush1.bf16.msra.mxu0 0
        %1088 = vmatprep.subr.bf16.mxu0 0
        %1089 = vmatpush1.bf16.msra.mxu0 0
        %1090 = vmatprep.subr.bf16.mxu0 0
        %1091 = vmatpush1.bf16.msra.mxu0 0
        %1092 = vmatprep.subr.bf16.mxu0 0
        %1093 = vmatpush1.bf16.msra.mxu0 0
        %1094 = vmatprep.mubr.bf16.mxu0 0
        %1095 = vmatmul.mubr.bf16.gmra.mrb[0].mxu0 %v1057
        %v1096 = vpop.f32.mrb[0].mxu0
        %v1097 = vadd.f32 0.0, %v1096
        %v1098 = vpop.f32.mrb[0].mxu0
        %v1099 = vpop.f32.mrb[0].mxu0
        %v1100 = vpop.f32.mrb[0].mxu0
        %1101 = vdwg.mxu0
        %v1102 = vpack.c.bf16 %v1097, %v1097
        %v1104 = vunpack.c.l.b16 %v1102
        %v1105 = vpack.c.b16 %v1104, %v1104
        %1106 = vrot.lane.b32.xlu0 %v1105, 24
        %v1107 = vpop.permute.xlu0 %1106
        %vm1109 = vcmask 257216
        %1110 = vst.msk [vmem:[#allocation5] sm:$0xf] %vm1109, %v1107
        %v1111 = vld [vmem:[#allocation5] sm:$0xf]
        %v1112 = vld [vmem:[%s4] sm:$0xf]
        %v1113 = vld [vmem:[%s4 + $0x4] sm:$0xf]
        %v1114 = vld [vmem:[%s4 + $0x8] sm:$0xf]
        %v1115 = vld [vmem:[%s4 + $0xc] sm:$0xf]
        %v1116 = vld [vmem:[%s5] sm:$0x1]
        %v1118 = vlaneseq
        %v1119 = vshrl.u32 %v1118, 7
        %v1120 = vsub.s32 0, %v1119
        %v1121 = vrot.slane %v1116, %v1120
        %v1127 = vunpack.c.l.b16 %v1112
        %v1128 = vunpack.c.l.b16 %v1113
        %v1129 = vunpack.c.l.b16 %v1114
        %v1130 = vunpack.c.l.b16 %v1115
        %v1131 = vpack.c.b16 %v1128, %v1127
        %v1132 = vpack.c.b16 %v1130, %v1129
        %vm1135 = vcmask 261120
        %v1137 = vsel %vm1135, %v1111, 0
        %1139 = vmatprep.subr.bf16.mxu0 0
        %1140 = vmatpush1.bf16.msra.mxu0 %v1131
        %1141 = vmatprep.subr.bf16.mxu0 0
        %1142 = vmatpush1.bf16.msra.mxu0 %v1132
        %1143 = vmatprep.subr.bf16.mxu0 0
        %1144 = vmatpush1.bf16.msra.mxu0 0
        %1145 = vmatprep.subr.bf16.mxu0 0
        %1146 = vmatpush1.bf16.msra.mxu0 0
        %1147 = vmatprep.subr.bf16.mxu0 0
        %1148 = vmatpush1.bf16.msra.mxu0 0
        %1149 = vmatprep.subr.bf16.mxu0 0
        %1150 = vmatpush1.bf16.msra.mxu0 0
        %1151 = vmatprep.subr.bf16.mxu0 0
        %1152 = vmatpush1.bf16.msra.mxu0 0
        %1153 = vmatprep.subr.bf16.mxu0 0
        %1154 = vmatpush1.bf16.msra.mxu0 0
        %1155 = vmatprep.subr.bf16.mxu0 0
        %1156 = vmatpush1.bf16.msra.mxu0 0
        %1157 = vmatprep.subr.bf16.mxu0 0
        %1158 = vmatpush1.bf16.msra.mxu0 0
        %1159 = vmatprep.subr.bf16.mxu0 0
        %1160 = vmatpush1.bf16.msra.mxu0 0
        %1161 = vmatprep.subr.bf16.mxu0 0
        %1162 = vmatpush1.bf16.msra.mxu0 0
        %1163 = vmatprep.subr.bf16.mxu0 0
        %1164 = vmatpush1.bf16.msra.mxu0 0
        %1165 = vmatprep.subr.bf16.mxu0 0
        %1166 = vmatpush1.bf16.msra.mxu0 0
        %1167 = vmatprep.subr.bf16.mxu0 0
        %1168 = vmatpush1.bf16.msra.mxu0 0
        %1169 = vmatprep.subr.bf16.mxu0 0
        %1170 = vmatpush1.bf16.msra.mxu0 0
        %1171 = vmatprep.mubr.bf16.mxu0 0
        %1172 = vmatmul.mubr.bf16.gmra.mrb[0].mxu0 %v1137
        %v1173 = vpop.f32.mrb[0].mxu0
        %v1174 = vadd.f32 %v1121, %v1173
        %v1175 = vpop.f32.mrb[0].mxu0
        %v1176 = vpop.f32.mrb[0].mxu0
        %v1177 = vpop.f32.mrb[0].mxu0
        %1178 = vdwg.mxu0
        %v1179 = vunpack.c.l.bf16 %v603
        %v1180 = vadd.f32 %v1179, %v1174
        %v1181 = vld [vmem:[%s6] sm:$0x1]
        %v1182 = vld [vmem:[%s7] sm:$0x1]
        %v1183 = vsel %vm1135, %v1180, 0.0
        %1184 = vadd.xlane.f32.xlu0 %v1183
        %v1185 = vpop.xlane.xlu0 %1184
        %v1186 = vrcp.pop 32.0
        %v1187 = vmul.f32 %v1185, %v1186
        %v1188 = vsub.f32 %v1180, %v1187
        %v1189 = vmul.f32 %v1188, %v1188
        %v1190 = vsel %vm1135, %v1189, 0.0
        %1191 = vadd.xlane.f32.xlu0 %v1190
        %v1192 = vpop.xlane.xlu0 %1191
        %v1193 = vmul.f32 %v1192, %v1186
        %v1194 = vadd.f32 %v1193, 1e-05
        %v1195 = vrsqrt.pop %v1194
        %v1196 = vmul.f32 %v1188, %v1195
        %v1198 = vlaneseq
        %v1199 = vshrl.u32 %v1198, 7
        %v1200 = vsub.s32 0, %v1199
        %v1201 = vrot.slane %v1181, %v1200
        %v1203 = vmul.f32 %v1196, %v1201
        %v1205 = vlaneseq
        %v1206 = vshrl.u32 %v1205, 7
        %v1207 = vsub.s32 0, %v1206
        %v1208 = vrot.slane %v1182, %v1207
        %v1210 = vadd.f32 %v1203, %v1208
        %v1211 = vpack.c.bf16 %v1210, %v1210
        %v1212 = vld [vmem:[%s8] sm:$0xf]
        %v1213 = vld [vmem:[%s8 + $0x4] sm:$0xf]
        %v1214 = vld [vmem:[%s8 + $0x8] sm:$0xf]
        %v1215 = vld [vmem:[%s8 + $0xc] sm:$0xf]
        %v1216 = vld [vmem:[%s9] sm:$0x1]
        %v1218 = vlaneseq
        %v1219 = vshrl.u32 %v1218, 7
        %v1220 = vsub.s32 0, %v1219
        %v1221 = vrot.slane %v1216, %v1220
        %v1227 = vunpack.c.l.b16 %v1212
        %v1228 = vunpack.c.l.b16 %v1213
        %v1229 = vunpack.c.l.b16 %v1214
        %v1230 = vunpack.c.l.b16 %v1215
        %v1231 = vpack.c.b16 %v1228, %v1227
        %v1232 = vpack.c.b16 %v1230, %v1229
        %v1236 = vsel %vm1135, %v1211, 0
        %1238 = vmatprep.subr.bf16.mxu0 0
        %1239 = vmatpush1.bf16.msra.mxu0 %v1231
        %1240 = vmatprep.subr.bf16.mxu0 0
        %1241 = vmatpush1.bf16.msra.mxu0 %v1232
        %1242 = vmatprep.subr.bf16.mxu0 0
        %1243 = vmatpush1.bf16.msra.mxu0 0
        %1244 = vmatprep.subr.bf16.mxu0 0
        %1245 = vmatpush1.bf16.msra.mxu0 0
        %1246 = vmatprep.subr.bf16.mxu0 0
        %1247 = vmatpush1.bf16.msra.mxu0 0
        %1248 = vmatprep.subr.bf16.mxu0 0
        %1249 = vmatpush1.bf16.msra.mxu0 0
        %1250 = vmatprep.subr.bf16.mxu0 0
        %1251 = vmatpush1.bf16.msra.mxu0 0
        %1252 = vmatprep.subr.bf16.mxu0 0
        %1253 = vmatpush1.bf16.msra.mxu0 0
        %1254 = vmatprep.subr.bf16.mxu0 0
        %1255 = vmatpush1.bf16.msra.mxu0 0
        %1256 = vmatprep.subr.bf16.mxu0 0
        %1257 = vmatpush1.bf16.msra.mxu0 0
        %1258 = vmatprep.subr.bf16.mxu0 0
        %1259 = vmatpush1.bf16.msra.mxu0 0
        %1260 = vmatprep.subr.bf16.mxu0 0
        %1261 = vmatpush1.bf16.msra.mxu0 0
        %1262 = vmatprep.subr.bf16.mxu0 0
        %1263 = vmatpush1.bf16.msra.mxu0 0
        %1264 = vmatprep.subr.bf16.mxu0 0
        %1265 = vmatpush1.bf16.msra.mxu0 0
        %1266 = vmatprep.subr.bf16.mxu0 0
        %1267 = vmatpush1.bf16.msra.mxu0 0
        %1268 = vmatprep.subr.bf16.mxu0 0
        %1269 = vmatpush1.bf16.msra.mxu0 0
        %1270 = vmatprep.mubr.bf16.mxu0 0
        %1271 = vmatmul.mubr.bf16.gmra.mrb[0].mxu0 %v1236
        %v1272 = vpop.f32.mrb[0].mxu0
        %v1273 = vadd.f32 %v1221, %v1272
        %v1274 = vpop.f32.mrb[0].mxu0
        %v1275 = vpop.f32.mrb[0].mxu0
        %v1276 = vpop.f32.mrb[0].mxu0
        %1277 = vdwg.mxu0
        %v1278 = vmul.f32 %v1273, %v1273
        %v1279 = vmul.f32 %v1273, %v1278
        %v1280 = vmul.f32 %v1279, 0.044715
        %v1281 = vadd.f32 %v1273, %v1280
        %v1282 = vmul.f32 %v1281, 0.7978846
        %v1283 = vtanh.pop %v1282
        %v1284 = vadd.f32 %v1283, 1.0
        %v1285 = vmul.f32 %v1284, 0.5
        %v1286 = vmul.f32 %v1273, %v1285
        %v1287 = vpack.c.bf16 %v1286, %v1286
        %v1288 = vld [vmem:[%s10] sm:$0xf]
        %v1289 = vld [vmem:[%s10 + $0x4] sm:$0xf]
        %v1290 = vld [vmem:[%s10 + $0x8] sm:$0xf]
        %v1291 = vld [vmem:[%s10 + $0xc] sm:$0xf]
        %v1292 = vld [vmem:[%s10 + $0x10] sm:$0xf]
        %v1293 = vld [vmem:[%s10 + $0x14] sm:$0xf]
        %v1294 = vld [vmem:[%s10 + $0x18] sm:$0xf]
        %v1295 = vld [vmem:[%s10 + $0x1c] sm:$0xf]
        %v1296 = vld [vmem:[%s11] sm:$0x1]
        %v1298 = vlaneseq
        %v1299 = vshrl.u32 %v1298, 7
        %v1300 = vsub.s32 0, %v1299
        %v1301 = vrot.slane %v1296, %v1300
        %v1311 = vunpack.c.l.b16 %v1288
        %v1312 = vunpack.c.l.b16 %v1289
        %v1313 = vunpack.c.l.b16 %v1290
        %v1314 = vunpack.c.l.b16 %v1291
        %v1315 = vunpack.c.l.b16 %v1292
        %v1316 = vunpack.c.l.b16 %v1293
        %v1317 = vunpack.c.l.b16 %v1294
        %v1318 = vunpack.c.l.b16 %v1295
        %v1319 = vpack.c.b16 %v1312, %v1311
        %v1320 = vpack.c.b16 %v1314, %v1313
        %v1321 = vpack.c.b16 %v1316, %v1315
        %v1322 = vpack.c.b16 %v1318, %v1317
        %vm1327 = vcmask 523264
        %v1329 = vsel %vm1327, %v1287, 0
        %1331 = vmatprep.subr.bf16.mxu0 0
        %1332 = vmatpush1.bf16.msra.mxu0 %v1319
        %1333 = vmatprep.subr.bf16.mxu0 0
        %1334 = vmatpush1.bf16.msra.mxu0 %v1320
        %1335 = vmatprep.subr.bf16.mxu0 0
        %1336 = vmatpush1.bf16.msra.mxu0 %v1321
        %1337 = vmatprep.subr.bf16.mxu0 0
        %1338 = vmatpush1.bf16.msra.mxu0 %v1322
        %1339 = vmatprep.subr.bf16.mxu0 0
        %1340 = vmatpush1.bf16.msra.mxu0 0
        %1341 = vmatprep.subr.bf16.mxu0 0
        %1342 = vmatpush1.bf16.msra.mxu0 0
        %1343 = vmatprep.subr.bf16.mxu0 0
        %1344 = vmatpush1.bf16.msra.mxu0 0
        %1345 = vmatprep.subr.bf16.mxu0 0
        %1346 = vmatpush1.bf16.msra.mxu0 0
        %1347 = vmatprep.subr.bf16.mxu0 0
        %1348 = vmatpush1.bf16.msra.mxu0 0
        %1349 = vmatprep.subr.bf16.mxu0 0
        %1350 = vmatpush1.bf16.msra.mxu0 0
        %1351 = vmatprep.subr.bf16.mxu0 0
        %1352 = vmatpush1.bf16.msra.mxu0 0
        %1353 = vmatprep.subr.bf16.mxu0 0
        %1354 = vmatpush1.bf16.msra.mxu0 0
        %1355 = vmatprep.subr.bf16.mxu0 0
        %1356 = vmatpush1.bf16.msra.mxu0 0
        %1357 = vmatprep.subr.bf16.mxu0 0
        %1358 = vmatpush1.bf16.msra.mxu0 0
        %1359 = vmatprep.subr.bf16.mxu0 0
        %1360 = vmatpush1.bf16.msra.mxu0 0
        %1361 = vmatprep.subr.bf16.mxu0 0
        %1362 = vmatpush1.bf16.msra.mxu0 0
        %1363 = vmatprep.mubr.bf16.mxu0 0
        %1364 = vmatmul.mubr.bf16.gmra.mrb[0].mxu0 %v1329
        %v1365 = vpop.f32.mrb[0].mxu0
        %v1366 = vadd.f32 %v1301, %v1365
        %v1367 = vpop.f32.mrb[0].mxu0
        %v1368 = vpop.f32.mrb[0].mxu0
        %v1369 = vpop.f32.mrb[0].mxu0
        %1370 = vdwg.mxu0
        %v1371 = vadd.f32 %v1210, %v1366
        %v1372 = vld [vmem:[%s12] sm:$0x1]
        %v1373 = vld [vmem:[%s13] sm:$0x1]
        %v1374 = vsel %vm1135, %v1371, 0.0
        %1375 = vadd.xlane.f32.xlu0 %v1374
        %v1376 = vpop.xlane.xlu0 %1375
        %v1377 = vmul.f32 %v1376, %v1186
        %v1378 = vsub.f32 %v1371, %v1377
        %v1379 = vmul.f32 %v1378, %v1378
        %v1380 = vsel %vm1135, %v1379, 0.0
        %1381 = vadd.xlane.f32.xlu0 %v1380
        %v1382 = vpop.xlane.xlu0 %1381
        %v1383 = vmul.f32 %v1382, %v1186
        %v1384 = vadd.f32 %v1383, 1e-05
        %v1385 = vrsqrt.pop %v1384
        %v1386 = vmul.f32 %v1378, %v1385
        %v1388 = vlaneseq
        %v1389 = vshrl.u32 %v1388, 7
        %v1390 = vsub.s32 0, %v1389
        %v1391 = vrot.slane %v1372, %v1390
        %v1393 = vmul.f32 %v1386, %v1391
        %v1395 = vlaneseq
        %v1396 = vshrl.u32 %v1395, 7
        %v1397 = vsub.s32 0, %v1396
        %v1398 = vrot.slane %v1373, %v1397
        %v1400 = vadd.f32 %v1393, %v1398
        %v1401 = vpack.c.bf16 %v1400, %v1400
        %vm1402 = vcmask 257024
        %1403 = vst.msk [vmem:[%s507] sm:$0xf] %vm1402, %v1401
        %s1404 = sand.u32 %s357, 1
        %s1405 = scalar_lea.sflag [#allocation8], %s1404
        %s1406 = sand.u32 %s357, 1
        %s1407 = smul.addr %s1406, 4
        %s1408 = scalar_lea.vmem [#allocation9], %s1407
        // Predicated region
        $region85: #{tpu_custom_call.1} parent=75 // pred_check
          %p1409 = pneg %p367
        $region86: #{tpu_custom_call.1} parent=75 // pred_check_branch
          %1411 = sbr.rel (%p1409) target = $region88
        $region87: #{tpu_custom_call.1} parent=75 // pred_region
          %s1413 = ssub.s32 64, 64
          %1414 = vsyncadd %s1405, %s1413
          %s1415 = sadd.s32 %s36, %s35
          %s1416 = smul.addr %s1415, 64
          %s1417 = scalar_lea.hbm %s14, %s1416
          %s1419 = sshll.u32 %s1408, 4
          %s1420 = int_to_ptr.vmem [resolvable:$true] %s1419
          %1422 = dma.vmem_to_hbm [thread:$0]  %s1420, 64, %s1417, %s1405
        $region88: #{tpu_custom_call.1} parent=75 // pred_fallthru
          _
      $region76: #{tpu_custom_call.1} parent=5 // pred_fallthru
        _
      %p1423 = scmp.le.s32.totalorder 2, %s26
      // Predicated region
      $region89: #{tpu_custom_call.1} parent=5 // pred_check
        %p1424 = pneg %p1423
      $region90: #{tpu_custom_call.1} parent=5 // pred_check_branch
        %1426 = sbr.rel (%p1424) target = $region92
      $region91: #{tpu_custom_call.1} parent=5 // pred_region
        %s1427 = ssub.s32 %s26, 2
        // Predicated region
        $region93: #{tpu_custom_call.1} parent=91 // pred_check
          %p1428 = pneg %p373
        $region94: #{tpu_custom_call.1} parent=91 // pred_check_branch
          %1430 = sbr.rel (%p1428) target = $region96
        $region95: #{tpu_custom_call.1} parent=91 // pred_region
          %s1431 = sand.u32 %s358, 1
          %s1432 = scalar_lea.sflag [#allocation8], %s1431
          %s1433 = sand.u32 %s358, 1
          %s1434 = smul.addr %s1433, 4
          %s1435 = scalar_lea.vmem [#allocation9], %s1434
          %1436 = dma.done %s1432, 64
        $region96: #{tpu_custom_call.1} parent=91 // pred_fallthru
          _
      $region92: #{tpu_custom_call.1} parent=5 // pred_fallthru
        _
    $region6: #{tpu_custom_call.1} parent=1 // loop_footer
      %s30 = sadd.s32 1, %s26
    $region7: #{tpu_custom_call.1} parent=1 // loop_footer_branch
      %25 = sbr.rel target = $region3
    $region8: #{tpu_custom_call.1} parent=1 // loop_exit
      _
    %1437 = vsyncpa [#allocation7], 1
    %s1438 = scalar_lea.sflag [#allocation7], 1
    %1439 = vsyncpa %s1438, 1
    %1440 = vsyncpa [#allocation8], 1
    %s1441 = scalar_lea.sflag [#allocation8], 1
    %1442 = vsyncpa %s1441, 1

</llo_original>
